<compile_context>
chip_gen: v7x
topology: tpu7x:2x2x1
jax: 0.10.0
libtpu: 0.0.40
codegen_flags: <defaults>
</compile_context>

<pallas_src>
import numpy as np
import jax
import jax.numpy as jnp
from jax.experimental import pallas as pl
from jax.experimental.pallas import tpu as pltpu

# ---------------- configuration (matches the chosen Decoder instantiation) ----
LATENT = 32
C = 4          # num_channels
K = 3          # kernel_size
P = 1          # padding for kernel_size == 3
B = 2          # batch
COUT = 3       # final RGB channels
H0, H1, H2 = 8, 16, 32          # spatial sizes: 8 -> (x2) 16 -> (x2) 32
R0 = B * (H0 + 2 * P)           # 20 padded rows feeding conv1
R1 = B * (H1 + 2 * P)           # 36 padded rows feeding conv2
R2 = B * (H2 + 2 * P)           # 68 padded rows feeding conv3
N1 = R0 - 2 * P                 # 18 conv1 output rows (incl. 2 garbage rows)
N2 = R1 - 2 * P                 # 34 conv2 output rows
N3 = R2 - 2 * P                 # 66 conv3 output rows
OUT_LANES = 128                 # conv3 output lanes padded 96 -> 128 (lane-dense store)

# TODO(synk): the no_upsample=True branch (nn.ConvTranspose2d) is not exercised
# by this configuration and is not implemented here.


# ---------------------------- Pallas kernel -----------------------------------
def decoder_kernel(xblk_ref, fcw_ref, fcb_ref,
                   c1w_ref, c1b_ref, u1w_ref, u1h_ref,
                   c2w_ref, c2b_ref, u2w_ref, u2h_ref,
                   c3w_ref, c3b_ref, out_ref):
    f32 = jnp.float32
    bf16 = jnp.bfloat16

    def relu(v):
        return jnp.maximum(v, 0.0)

    def band_conv(x, w_ref, b_ref, n_out):
        # K banded matmuls; the row dy-shifts replace the H-padding concats and
        # the W zero-padding is already folded into the band matrices.
        acc = jnp.dot(x[0:n_out].astype(bf16), w_ref[0],
                      preferred_element_type=f32)
        acc = acc + jnp.dot(x[1:n_out + 1].astype(bf16), w_ref[1],
                            preferred_element_type=f32)
        acc = acc + jnp.dot(x[2:n_out + 2].astype(bf16), w_ref[2],
                            preferred_element_type=f32)
        return acc + b_ref[...]

    # fc + ReLU, landing directly in the padded stacked-rows layout (R0, H0*C).
    a0 = relu(jnp.dot(xblk_ref[...], fcw_ref[...],
                      preferred_element_type=f32) + fcb_ref[...])

    # conv1 (8x8, C->C) + ReLU
    h1 = relu(band_conv(a0, c1w_ref, c1b_ref, N1))             # (18, 32)

    # bilinear upsample 8 -> 16 (W axis, then H axis which also re-pads rows)
    t1 = jnp.dot(h1.astype(bf16), u1w_ref[...], preferred_element_type=f32)
    a1 = jnp.dot(u1h_ref[...], t1.astype(bf16), preferred_element_type=f32)

    # conv2 (16x16, C->C) + ReLU
    h2 = relu(band_conv(a1, c2w_ref, c2b_ref, N2))             # (34, 64)

    # bilinear upsample 16 -> 32
    t2 = jnp.dot(h2.astype(bf16), u2w_ref[...], preferred_element_type=f32)
    a2 = jnp.dot(u2h_ref[...], t2.astype(bf16), preferred_element_type=f32)

    # conv3 (32x32, C->3, lanes padded to 128) + sigmoid (EUP reciprocal)
    h3 = band_conv(a2, c3w_ref, c3b_ref, N3)                   # (66, 128)
    y = pl.reciprocal(1.0 + jnp.exp(-h3), approx=True)

    # De-interleave the per-image row blocks into the (B, H2, 128) output.
    for b in range(B):
        out_ref[b] = y[b * (H2 + 2 * P): b * (H2 + 2 * P) + H2]


# ---------------------------- host-side weight plumbing ------------------------
def _bilinear_matrix(n_in):
    """Row-stochastic (2n, n) matrix reproducing nn.Upsample(scale=2, 'bilinear')."""
    n_out = 2 * n_in
    U = np.zeros((n_out, n_in), dtype=np.float32)
    for o in range(n_out):
        src = (o + 0.5) / 2.0 - 0.5
        src = min(max(src, 0.0), float(n_in - 1))
        i0 = int(np.floor(src))
        i1 = min(i0 + 1, n_in - 1)
        f = src - i0
        U[o, i0] += 1.0 - f
        U[o, i1] += f
    return U


def _band_mats(w_conv, W, Cin, Cout, out_cols):
    """(Cout,Cin,K,K) conv weights -> K banded (W*Cin, out_cols) matrices with the
    W zero-padding absorbed (out-of-range taps dropped)."""
    w = np.asarray(w_conv, np.float32)
    mats = np.zeros((K, W * Cin, out_cols), np.float32)
    for dy in range(K):
        for dx in range(K):
            tap = w[:, :, dy, dx].T                      # (Cin, Cout)
            for wo in range(W):
                wi = wo + dx - P
                if 0 <= wi < W:
                    mats[dy, wi * Cin:(wi + 1) * Cin,
                         wo * Cout:(wo + 1) * Cout] += tap
    return mats


def _padded_up_h(U, h_in, h_out, n_in_rows):
    """Block-diagonal H-upsample matrix: reads the (garbage-separated) conv output
    rows and writes the zero-padded stacked-rows layout for the next conv."""
    out = np.zeros((B * (h_out + 2 * P), n_in_rows), np.float32)
    for b in range(B):
        r0 = b * (h_out + 2 * P) + P
        c0 = b * (h_in + 2 * P)
        out[r0:r0 + h_out, c0:c0 + h_in] = U
    return out


def _full_spec(shape):
    nd = len(shape)
    return pl.BlockSpec(shape, lambda i, _nd=nd: (0,) * _nd)


def make_decoder_fn(params):
    """One-time host-side preprocessing; returns a jitted forward(x)."""
    bf16 = jnp.bfloat16

    # fc: PyTorch Linear (out=C*8*8, in=LATENT); flat output index o = c*64 + h*8 + w.
    fc_w = np.asarray(params['fc_w'], np.float32)
    fc_b = np.asarray(params['fc_b'], np.float32)
    fcw = jnp.asarray(fc_w.reshape(C, H0, H0, LATENT)
                      .transpose(1, 3, 2, 0)                    # (h, l, w, c)
                      .reshape(H0 * LATENT, H0 * C), bf16)      # row = h*LATENT + l
    fcb_img = fc_b.reshape(C, H0, H0).transpose(1, 2, 0).reshape(H0, H0 * C)
    fcb_np = np.zeros((R0, H0 * C), np.float32)
    for b in range(B):
        fcb_np[b * (H0 + 2 * P) + P: b * (H0 + 2 * P) + P + H0] = fcb_img
    fcb = jnp.asarray(fcb_np)

    c1w = jnp.asarray(_band_mats(params['c1_w'], H0, C, C, H0 * C), bf16)
    c1b = jnp.asarray(np.tile(np.asarray(params['c1_b'], np.float32), H0)[None, :])
    c2w = jnp.asarray(_band_mats(params['c2_w'], H1, C, C, H1 * C), bf16)
    c2b = jnp.asarray(np.tile(np.asarray(params['c2_b'], np.float32), H1)[None, :])
    c3w = jnp.asarray(_band_mats(params['c3_w'], H2, C, COUT, OUT_LANES), bf16)
    c3b_np = np.zeros((1, OUT_LANES), np.float32)
    c3b_np[0, :H2 * COUT] = np.tile(np.asarray(params['c3_b'], np.float32), H2)
    c3b = jnp.asarray(c3b_np)

    U8, U16 = _bilinear_matrix(H0), _bilinear_matrix(H1)
    eyeC = np.eye(C, dtype=np.float32)
    u1w = jnp.asarray(np.kron(U8, eyeC).T, bf16)        # (32, 64)
    u2w = jnp.asarray(np.kron(U16, eyeC).T, bf16)       # (64, 128)
    u1h = jnp.asarray(_padded_up_h(U8, H0, H1, N1), bf16)    # (36, 18)
    u2h = jnp.asarray(_padded_up_h(U16, H1, H2, N2), bf16)   # (68, 34)

    consts = (fcw, fcb, c1w, c1b, u1w, u1h, c2w, c2b, u2w, u2h, c3w, c3b)
    in_shapes = [(R0, H0 * LATENT)] + [tuple(cst.shape) for cst in consts]

    kernel_fn = pl.pallas_call(
        decoder_kernel,
        out_shape=jax.ShapeDtypeStruct((B, H2, OUT_LANES), jnp.float32),
        grid=(1,),
        in_specs=[_full_spec(s) for s in in_shapes],
        out_specs=pl.BlockSpec((B, H2, OUT_LANES), lambda i: (0, 0, 0)),
        compiler_params=pltpu.CompilerParams(dimension_semantics=("arbitrary",)),
    )

    eyeH0 = jnp.eye(H0, dtype=jnp.float32)

    @jax.jit
    def forward(x):
        # Layout plumbing only: place x block-diagonally over the fc row index so
        # the single in-kernel fc matmul lands directly in the padded-rows layout.
        xblk = jnp.einsum('hk,bl->bhkl', eyeH0, x.astype(jnp.float32))
        xblk = xblk.reshape(B, H0, H0 * LATENT)
        xblk = jnp.pad(xblk, ((0, 0), (P, P), (0, 0)))
        xblk = xblk.reshape(R0, H0 * LATENT).astype(bf16)

        y = kernel_fn(xblk, *consts)                            # (B, 32, 128)
        y = y[:, :, :H2 * COUT].reshape(B, H2, H2, COUT)
        return y.transpose(0, 3, 1, 2)                          # NCHW (B, 3, 32, 32)

    return forward


# ---------------------------- pure-JAX reference -------------------------------
def reference_forward(x, params):
    h = jax.nn.relu(x @ params['fc_w'].T + params['fc_b'])
    h = h.reshape(x.shape[0], C, H0, H0)

    def conv(t, w, b):
        y = jax.lax.conv_general_dilated(
            t, w, window_strides=(1, 1), padding=[(P, P), (P, P)],
            dimension_numbers=('NCHW', 'OIHW', 'NCHW'),
            precision=jax.lax.Precision.HIGHEST)
        return y + b[None, :, None, None]

    def up(t, U):
        Uj = jnp.asarray(U)
        t = jnp.einsum('Hh,bchw->bcHw', Uj, t, precision=jax.lax.Precision.HIGHEST)
        t = jnp.einsum('Ww,bchw->bchW', Uj, t, precision=jax.lax.Precision.HIGHEST)
        return t

    h = jax.nn.relu(conv(h, params['c1_w'], params['c1_b']))
    h = up(h, _bilinear_matrix(H0))
    h = jax.nn.relu(conv(h, params['c2_w'], params['c2_b']))
    h = up(h, _bilinear_matrix(H1))
    h = conv(h, params['c3_w'], params['c3_b'])
    return jax.nn.sigmoid(h)


# ---------------------------- main ---------------------------------------------
if __name__ == "__main__":
    key = jax.random.PRNGKey(0)
    ks = jax.random.split(key, 9)
    params = {
        'fc_w': 0.05 * jax.random.normal(ks[0], (C * H0 * H0, LATENT), jnp.float32),
        'fc_b': 0.05 * jax.random.normal(ks[1], (C * H0 * H0,), jnp.float32),
        'c1_w': 0.1 * jax.random.normal(ks[2], (C, C, K, K), jnp.float32),
        'c1_b': 0.1 * jax.random.normal(ks[3], (C,), jnp.float32),
        'c2_w': 0.1 * jax.random.normal(ks[4], (C, C, K, K), jnp.float32),
        'c2_b': 0.1 * jax.random.normal(ks[5], (C,), jnp.float32),
        'c3_w': 0.1 * jax.random.normal(ks[6], (COUT, C, K, K), jnp.float32),
        'c3_b': 0.1 * jax.random.normal(ks[7], (COUT,), jnp.float32),
    }
    x = jax.random.normal(ks[8], (B, LATENT), jnp.float32)

    decoder = make_decoder_fn(params)     # one-time host-side weight prep
    out = jax.block_until_ready(decoder(x))
    assert out.shape == (B, COUT, H2, H2), out.shape

    ref = jax.block_until_ready(reference_forward(x, params))
    max_err = float(jnp.max(jnp.abs(out - ref)))
    assert np.isfinite(max_err) and max_err < 1e-2, f"mismatch vs reference: {max_err}"

    print("KERNEL_OK")
</pallas_src>

<mosaic_0001>
module attributes {stable_mosaic.version = 11 : i64} {
  func.func @decoder_kernel(%arg0: i32, %arg1: memref<20x256xbf16, #tpu.memory_space<vmem>>, %arg2: memref<256x32xbf16, #tpu.memory_space<vmem>>, %arg3: memref<20x32xf32, #tpu.memory_space<vmem>>, %arg4: memref<3x32x32xbf16, #tpu.memory_space<vmem>>, %arg5: memref<1x32xf32, #tpu.memory_space<vmem>>, %arg6: memref<32x64xbf16, #tpu.memory_space<vmem>>, %arg7: memref<36x18xbf16, #tpu.memory_space<vmem>>, %arg8: memref<3x64x64xbf16, #tpu.memory_space<vmem>>, %arg9: memref<1x64xf32, #tpu.memory_space<vmem>>, %arg10: memref<64x128xbf16, #tpu.memory_space<vmem>>, %arg11: memref<68x34xbf16, #tpu.memory_space<vmem>>, %arg12: memref<3x128x128xbf16, #tpu.memory_space<vmem>>, %arg13: memref<1x128xf32, #tpu.memory_space<vmem>>, %arg14: memref<2x32x128xf32, #tpu.memory_space<vmem>>) attributes {dimension_semantics = [#tpu.dimension_semantics<arbitrary>], iteration_bounds = array<i64: 1>, scalar_prefetch = 0 : i64, scratch_operands = 0 : i64, tpu.core_type = #tpu.core_type<tc>, window_params = [{pipeline_mode = #tpu.pipeline_mode<synchronous>, transform_indices = @transform_0, window_bounds = array<i64: 20, 256>}, {pipeline_mode = #tpu.pipeline_mode<synchronous>, transform_indices = @transform_1, window_bounds = array<i64: 256, 32>}, {pipeline_mode = #tpu.pipeline_mode<synchronous>, transform_indices = @transform_2, window_bounds = array<i64: 20, 32>}, {pipeline_mode = #tpu.pipeline_mode<synchronous>, transform_indices = @transform_3, window_bounds = array<i64: 3, 32, 32>}, {pipeline_mode = #tpu.pipeline_mode<synchronous>, transform_indices = @transform_4, window_bounds = array<i64: 1, 32>}, {pipeline_mode = #tpu.pipeline_mode<synchronous>, transform_indices = @transform_5, window_bounds = array<i64: 32, 64>}, {pipeline_mode = #tpu.pipeline_mode<synchronous>, transform_indices = @transform_6, window_bounds = array<i64: 36, 18>}, {pipeline_mode = #tpu.pipeline_mode<synchronous>, transform_indices = @transform_7, window_bounds = array<i64: 3, 64, 64>}, {pipeline_mode = #tpu.pipeline_mode<synchronous>, transform_indices = @transform_8, window_bounds = array<i64: 1, 64>}, {pipeline_mode = #tpu.pipeline_mode<synchronous>, transform_indices = @transform_9, window_bounds = array<i64: 64, 128>}, {pipeline_mode = #tpu.pipeline_mode<synchronous>, transform_indices = @transform_10, window_bounds = array<i64: 68, 34>}, {pipeline_mode = #tpu.pipeline_mode<synchronous>, transform_indices = @transform_11, window_bounds = array<i64: 3, 128, 128>}, {pipeline_mode = #tpu.pipeline_mode<synchronous>, transform_indices = @transform_12, window_bounds = array<i64: 1, 128>}, {pipeline_mode = #tpu.pipeline_mode<synchronous>, transform_indices = @transform_13, window_bounds = array<i64: 2, 32, 128>}]} {
    %c0 = arith.constant 0 : index
    %c0_0 = arith.constant 0 : index
    %0 = vector.load %arg1[%c0, %c0_0] : memref<20x256xbf16, #tpu.memory_space<vmem>>, vector<20x256xbf16>
    %c0_1 = arith.constant 0 : index
    %c0_2 = arith.constant 0 : index
    %1 = vector.load %arg2[%c0_1, %c0_2] : memref<256x32xbf16, #tpu.memory_space<vmem>>, vector<256x32xbf16>
    %cst = arith.constant dense<0.000000e+00> : vector<20x32xf32>
    %2 = tpu.matmul %0, %1, %cst {dimension_numbers = #tpu.dot_dimension_numbers<[1], [0], [0], [1], [0, 0, 1, 1], [], []>} : vector<20x256xbf16>, vector<256x32xbf16>, vector<20x32xf32> -> vector<20x32xf32>
    %c0_3 = arith.constant 0 : index
    %c0_4 = arith.constant 0 : index
    %3 = vector.load %arg3[%c0_3, %c0_4] : memref<20x32xf32, #tpu.memory_space<vmem>>, vector<20x32xf32>
    %4 = arith.addf %2, %3 : vector<20x32xf32>
    %cst_5 = arith.constant 0.000000e+00 : f32
    %5 = vector.broadcast %cst_5 : f32 to vector<20x32xf32>
    %6 = arith.maximumf %4, %5 : vector<20x32xf32>
    %7 = vector.extract_strided_slice %6 {offsets = [0, 0], sizes = [18, 32], strides = [1, 1]} : vector<20x32xf32> to vector<18x32xf32>
    %8 = arith.truncf %7 : vector<18x32xf32> to vector<18x32xbf16>
    %c0_6 = arith.constant 0 : index
    %c0_7 = arith.constant 0 : index
    %c0_8 = arith.constant 0 : index
    %9 = vector.load %arg4[%c0_6, %c0_7, %c0_8] : memref<3x32x32xbf16, #tpu.memory_space<vmem>>, vector<1x32x32xbf16>
    %10 = vector.shape_cast %9 : vector<1x32x32xbf16> to vector<32x32xbf16>
    %cst_9 = arith.constant dense<0.000000e+00> : vector<18x32xf32>
    %11 = tpu.matmul %8, %10, %cst_9 {dimension_numbers = #tpu.dot_dimension_numbers<[1], [0], [0], [1], [0, 0, 1, 1], [], []>} : vector<18x32xbf16>, vector<32x32xbf16>, vector<18x32xf32> -> vector<18x32xf32>
    %12 = vector.extract_strided_slice %6 {offsets = [1, 0], sizes = [18, 32], strides = [1, 1]} : vector<20x32xf32> to vector<18x32xf32>
    %13 = arith.truncf %12 : vector<18x32xf32> to vector<18x32xbf16>
    %c1 = arith.constant 1 : index
    %c0_10 = arith.constant 0 : index
    %c0_11 = arith.constant 0 : index
    %14 = vector.load %arg4[%c1, %c0_10, %c0_11] : memref<3x32x32xbf16, #tpu.memory_space<vmem>>, vector<1x32x32xbf16>
    %15 = vector.shape_cast %14 : vector<1x32x32xbf16> to vector<32x32xbf16>
    %cst_12 = arith.constant dense<0.000000e+00> : vector<18x32xf32>
    %16 = tpu.matmul %13, %15, %cst_12 {dimension_numbers = #tpu.dot_dimension_numbers<[1], [0], [0], [1], [0, 0, 1, 1], [], []>} : vector<18x32xbf16>, vector<32x32xbf16>, vector<18x32xf32> -> vector<18x32xf32>
    %17 = arith.addf %11, %16 : vector<18x32xf32>
    %18 = vector.extract_strided_slice %6 {offsets = [2, 0], sizes = [18, 32], strides = [1, 1]} : vector<20x32xf32> to vector<18x32xf32>
    %19 = arith.truncf %18 : vector<18x32xf32> to vector<18x32xbf16>
    %c2 = arith.constant 2 : index
    %c0_13 = arith.constant 0 : index
    %c0_14 = arith.constant 0 : index
    %20 = vector.load %arg4[%c2, %c0_13, %c0_14] : memref<3x32x32xbf16, #tpu.memory_space<vmem>>, vector<1x32x32xbf16>
    %21 = vector.shape_cast %20 : vector<1x32x32xbf16> to vector<32x32xbf16>
    %cst_15 = arith.constant dense<0.000000e+00> : vector<18x32xf32>
    %22 = tpu.matmul %19, %21, %cst_15 {dimension_numbers = #tpu.dot_dimension_numbers<[1], [0], [0], [1], [0, 0, 1, 1], [], []>} : vector<18x32xbf16>, vector<32x32xbf16>, vector<18x32xf32> -> vector<18x32xf32>
    %23 = arith.addf %17, %22 : vector<18x32xf32>
    %c0_16 = arith.constant 0 : index
    %c0_17 = arith.constant 0 : index
    %24 = vector.load %arg5[%c0_16, %c0_17] : memref<1x32xf32, #tpu.memory_space<vmem>>, vector<1x32xf32>
    %25 = vector.broadcast %24 : vector<1x32xf32> to vector<18x32xf32>
    %26 = arith.addf %23, %25 : vector<18x32xf32>
    %cst_18 = arith.constant 0.000000e+00 : f32
    %27 = vector.broadcast %cst_18 : f32 to vector<18x32xf32>
    %28 = arith.maximumf %26, %27 : vector<18x32xf32>
    %29 = arith.truncf %28 : vector<18x32xf32> to vector<18x32xbf16>
    %c0_19 = arith.constant 0 : index
    %c0_20 = arith.constant 0 : index
    %30 = vector.load %arg6[%c0_19, %c0_20] : memref<32x64xbf16, #tpu.memory_space<vmem>>, vector<32x64xbf16>
    %cst_21 = arith.constant dense<0.000000e+00> : vector<18x64xf32>
    %31 = tpu.matmul %29, %30, %cst_21 {dimension_numbers = #tpu.dot_dimension_numbers<[1], [0], [0], [1], [0, 0, 1, 1], [], []>} : vector<18x32xbf16>, vector<32x64xbf16>, vector<18x64xf32> -> vector<18x64xf32>
    %c0_22 = arith.constant 0 : index
    %c0_23 = arith.constant 0 : index
    %32 = vector.load %arg7[%c0_22, %c0_23] : memref<36x18xbf16, #tpu.memory_space<vmem>>, vector<36x18xbf16>
    %33 = arith.truncf %31 : vector<18x64xf32> to vector<18x64xbf16>
    %cst_24 = arith.constant dense<0.000000e+00> : vector<36x64xf32>
    %34 = tpu.matmul %32, %33, %cst_24 {dimension_numbers = #tpu.dot_dimension_numbers<[1], [0], [0], [1], [0, 0, 1, 1], [], []>} : vector<36x18xbf16>, vector<18x64xbf16>, vector<36x64xf32> -> vector<36x64xf32>
    %35 = vector.extract_strided_slice %34 {offsets = [0, 0], sizes = [34, 64], strides = [1, 1]} : vector<36x64xf32> to vector<34x64xf32>
    %36 = arith.truncf %35 : vector<34x64xf32> to vector<34x64xbf16>
    %c0_25 = arith.constant 0 : index
    %c0_26 = arith.constant 0 : index
    %c0_27 = arith.constant 0 : index
    %37 = vector.load %arg8[%c0_25, %c0_26, %c0_27] : memref<3x64x64xbf16, #tpu.memory_space<vmem>>, vector<1x64x64xbf16>
    %38 = vector.shape_cast %37 : vector<1x64x64xbf16> to vector<64x64xbf16>
    %cst_28 = arith.constant dense<0.000000e+00> : vector<34x64xf32>
    %39 = tpu.matmul %36, %38, %cst_28 {dimension_numbers = #tpu.dot_dimension_numbers<[1], [0], [0], [1], [0, 0, 1, 1], [], []>} : vector<34x64xbf16>, vector<64x64xbf16>, vector<34x64xf32> -> vector<34x64xf32>
    %40 = vector.extract_strided_slice %34 {offsets = [1, 0], sizes = [34, 64], strides = [1, 1]} : vector<36x64xf32> to vector<34x64xf32>
    %41 = arith.truncf %40 : vector<34x64xf32> to vector<34x64xbf16>
    %c1_29 = arith.constant 1 : index
    %c0_30 = arith.constant 0 : index
    %c0_31 = arith.constant 0 : index
    %42 = vector.load %arg8[%c1_29, %c0_30, %c0_31] : memref<3x64x64xbf16, #tpu.memory_space<vmem>>, vector<1x64x64xbf16>
    %43 = vector.shape_cast %42 : vector<1x64x64xbf16> to vector<64x64xbf16>
    %cst_32 = arith.constant dense<0.000000e+00> : vector<34x64xf32>
    %44 = tpu.matmul %41, %43, %cst_32 {dimension_numbers = #tpu.dot_dimension_numbers<[1], [0], [0], [1], [0, 0, 1, 1], [], []>} : vector<34x64xbf16>, vector<64x64xbf16>, vector<34x64xf32> -> vector<34x64xf32>
    %45 = arith.addf %39, %44 : vector<34x64xf32>
    %46 = vector.extract_strided_slice %34 {offsets = [2, 0], sizes = [34, 64], strides = [1, 1]} : vector<36x64xf32> to vector<34x64xf32>
    %47 = arith.truncf %46 : vector<34x64xf32> to vector<34x64xbf16>
    %c2_33 = arith.constant 2 : index
    %c0_34 = arith.constant 0 : index
    %c0_35 = arith.constant 0 : index
    %48 = vector.load %arg8[%c2_33, %c0_34, %c0_35] : memref<3x64x64xbf16, #tpu.memory_space<vmem>>, vector<1x64x64xbf16>
    %49 = vector.shape_cast %48 : vector<1x64x64xbf16> to vector<64x64xbf16>
    %cst_36 = arith.constant dense<0.000000e+00> : vector<34x64xf32>
    %50 = tpu.matmul %47, %49, %cst_36 {dimension_numbers = #tpu.dot_dimension_numbers<[1], [0], [0], [1], [0, 0, 1, 1], [], []>} : vector<34x64xbf16>, vector<64x64xbf16>, vector<34x64xf32> -> vector<34x64xf32>
    %51 = arith.addf %45, %50 : vector<34x64xf32>
    %c0_37 = arith.constant 0 : index
    %c0_38 = arith.constant 0 : index
    %52 = vector.load %arg9[%c0_37, %c0_38] : memref<1x64xf32, #tpu.memory_space<vmem>>, vector<1x64xf32>
    %53 = vector.broadcast %52 : vector<1x64xf32> to vector<34x64xf32>
    %54 = arith.addf %51, %53 : vector<34x64xf32>
    %cst_39 = arith.constant 0.000000e+00 : f32
    %55 = vector.broadcast %cst_39 : f32 to vector<34x64xf32>
    %56 = arith.maximumf %54, %55 : vector<34x64xf32>
    %57 = arith.truncf %56 : vector<34x64xf32> to vector<34x64xbf16>
    %c0_40 = arith.constant 0 : index
    %c0_41 = arith.constant 0 : index
    %58 = vector.load %arg10[%c0_40, %c0_41] : memref<64x128xbf16, #tpu.memory_space<vmem>>, vector<64x128xbf16>
    %cst_42 = arith.constant dense<0.000000e+00> : vector<34x128xf32>
    %59 = tpu.matmul %57, %58, %cst_42 {dimension_numbers = #tpu.dot_dimension_numbers<[1], [0], [0], [1], [0, 0, 1, 1], [], []>} : vector<34x64xbf16>, vector<64x128xbf16>, vector<34x128xf32> -> vector<34x128xf32>
    %c0_43 = arith.constant 0 : index
    %c0_44 = arith.constant 0 : index
    %60 = vector.load %arg11[%c0_43, %c0_44] : memref<68x34xbf16, #tpu.memory_space<vmem>>, vector<68x34xbf16>
    %61 = arith.truncf %59 : vector<34x128xf32> to vector<34x128xbf16>
    %cst_45 = arith.constant dense<0.000000e+00> : vector<68x128xf32>
    %62 = tpu.matmul %60, %61, %cst_45 {dimension_numbers = #tpu.dot_dimension_numbers<[1], [0], [0], [1], [0, 0, 1, 1], [], []>} : vector<68x34xbf16>, vector<34x128xbf16>, vector<68x128xf32> -> vector<68x128xf32>
    %63 = vector.extract_strided_slice %62 {offsets = [0, 0], sizes = [66, 128], strides = [1, 1]} : vector<68x128xf32> to vector<66x128xf32>
    %64 = arith.truncf %63 : vector<66x128xf32> to vector<66x128xbf16>
    %c0_46 = arith.constant 0 : index
    %c0_47 = arith.constant 0 : index
    %c0_48 = arith.constant 0 : index
    %65 = vector.load %arg12[%c0_46, %c0_47, %c0_48] : memref<3x128x128xbf16, #tpu.memory_space<vmem>>, vector<1x128x128xbf16>
    %66 = vector.shape_cast %65 : vector<1x128x128xbf16> to vector<128x128xbf16>
    %cst_49 = arith.constant dense<0.000000e+00> : vector<66x128xf32>
    %67 = tpu.matmul %64, %66, %cst_49 {dimension_numbers = #tpu.dot_dimension_numbers<[1], [0], [0], [1], [0, 0, 1, 1], [], []>} : vector<66x128xbf16>, vector<128x128xbf16>, vector<66x128xf32> -> vector<66x128xf32>
    %68 = vector.extract_strided_slice %62 {offsets = [1, 0], sizes = [66, 128], strides = [1, 1]} : vector<68x128xf32> to vector<66x128xf32>
    %69 = arith.truncf %68 : vector<66x128xf32> to vector<66x128xbf16>
    %c1_50 = arith.constant 1 : index
    %c0_51 = arith.constant 0 : index
    %c0_52 = arith.constant 0 : index
    %70 = vector.load %arg12[%c1_50, %c0_51, %c0_52] : memref<3x128x128xbf16, #tpu.memory_space<vmem>>, vector<1x128x128xbf16>
    %71 = vector.shape_cast %70 : vector<1x128x128xbf16> to vector<128x128xbf16>
    %cst_53 = arith.constant dense<0.000000e+00> : vector<66x128xf32>
    %72 = tpu.matmul %69, %71, %cst_53 {dimension_numbers = #tpu.dot_dimension_numbers<[1], [0], [0], [1], [0, 0, 1, 1], [], []>} : vector<66x128xbf16>, vector<128x128xbf16>, vector<66x128xf32> -> vector<66x128xf32>
    %73 = arith.addf %67, %72 : vector<66x128xf32>
    %74 = vector.extract_strided_slice %62 {offsets = [2, 0], sizes = [66, 128], strides = [1, 1]} : vector<68x128xf32> to vector<66x128xf32>
    %75 = arith.truncf %74 : vector<66x128xf32> to vector<66x128xbf16>
    %c2_54 = arith.constant 2 : index
    %c0_55 = arith.constant 0 : index
    %c0_56 = arith.constant 0 : index
    %76 = vector.load %arg12[%c2_54, %c0_55, %c0_56] : memref<3x128x128xbf16, #tpu.memory_space<vmem>>, vector<1x128x128xbf16>
    %77 = vector.shape_cast %76 : vector<1x128x128xbf16> to vector<128x128xbf16>
    %cst_57 = arith.constant dense<0.000000e+00> : vector<66x128xf32>
    %78 = tpu.matmul %75, %77, %cst_57 {dimension_numbers = #tpu.dot_dimension_numbers<[1], [0], [0], [1], [0, 0, 1, 1], [], []>} : vector<66x128xbf16>, vector<128x128xbf16>, vector<66x128xf32> -> vector<66x128xf32>
    %79 = arith.addf %73, %78 : vector<66x128xf32>
    %c0_58 = arith.constant 0 : index
    %c0_59 = arith.constant 0 : index
    %80 = vector.load %arg13[%c0_58, %c0_59] : memref<1x128xf32, #tpu.memory_space<vmem>>, vector<1x128xf32>
    %81 = vector.broadcast %80 : vector<1x128xf32> to vector<66x128xf32>
    %82 = arith.addf %79, %81 : vector<66x128xf32>
    %cst_60 = arith.constant 0.000000e+00 : f32
    %83 = vector.broadcast %cst_60 : f32 to vector<66x128xf32>
    %84 = arith.subf %83, %82 : vector<66x128xf32>
    %85 = math.exp %84 : vector<66x128xf32>
    %cst_61 = arith.constant 1.000000e+00 : f32
    %86 = vector.broadcast %cst_61 : f32 to vector<66x128xf32>
    %87 = arith.addf %86, %85 : vector<66x128xf32>
    %88 = tpu.reciprocal %87 {approx = true} : vector<66x128xf32> -> vector<66x128xf32>
    %89 = vector.extract_strided_slice %88 {offsets = [0, 0], sizes = [32, 128], strides = [1, 1]} : vector<66x128xf32> to vector<32x128xf32>
    %c0_62 = arith.constant 0 : index
    %c0_63 = arith.constant 0 : index
    %c0_64 = arith.constant 0 : index
    %90 = vector.load %arg14[%c0_62, %c0_63, %c0_64] : memref<2x32x128xf32, #tpu.memory_space<vmem>>, vector<1x32x128xf32>
    %91 = vector.shape_cast %90 : vector<1x32x128xf32> to vector<32x128xf32>
    %92 = vector.shape_cast %89 : vector<32x128xf32> to vector<1x32x128xf32>
    tpu.vector_store %arg14[%c0_62, %c0_63, %c0_64], %92 {strides = array<i32>} : memref<2x32x128xf32, #tpu.memory_space<vmem>>, vector<1x32x128xf32>,
    %93 = vector.extract_strided_slice %88 {offsets = [34, 0], sizes = [32, 128], strides = [1, 1]} : vector<66x128xf32> to vector<32x128xf32>
    %c1_65 = arith.constant 1 : index
    %c0_66 = arith.constant 0 : index
    %c0_67 = arith.constant 0 : index
    %94 = vector.load %arg14[%c1_65, %c0_66, %c0_67] : memref<2x32x128xf32, #tpu.memory_space<vmem>>, vector<1x32x128xf32>
    %95 = vector.shape_cast %94 : vector<1x32x128xf32> to vector<32x128xf32>
    %96 = vector.shape_cast %93 : vector<32x128xf32> to vector<1x32x128xf32>
    tpu.vector_store %arg14[%c1_65, %c0_66, %c0_67], %96 {strides = array<i32>} : memref<2x32x128xf32, #tpu.memory_space<vmem>>, vector<1x32x128xf32>,
    return
  }
  func.func @transform_0(%arg0: i32) -> (i32, i32) {
    %c0_i32 = arith.constant 0 : i32
    %c0_i32_0 = arith.constant 0 : i32
    %c0_i32_1 = arith.constant 0 : i32
    return %c0_i32, %c0_i32_0 : i32, i32
  }
  func.func @transform_1(%arg0: i32) -> (i32, i32) {
    %c0_i32 = arith.constant 0 : i32
    %c0_i32_0 = arith.constant 0 : i32
    %c0_i32_1 = arith.constant 0 : i32
    return %c0_i32, %c0_i32_0 : i32, i32
  }
  func.func @transform_2(%arg0: i32) -> (i32, i32) {
    %c0_i32 = arith.constant 0 : i32
    %c0_i32_0 = arith.constant 0 : i32
    %c0_i32_1 = arith.constant 0 : i32
    return %c0_i32, %c0_i32_0 : i32, i32
  }
  func.func @transform_3(%arg0: i32) -> (i32, i32, i32) {
    %c0_i32 = arith.constant 0 : i32
    %c0_i32_0 = arith.constant 0 : i32
    %c0_i32_1 = arith.constant 0 : i32
    %c0_i32_2 = arith.constant 0 : i32
    return %c0_i32, %c0_i32_0, %c0_i32_1 : i32, i32, i32
  }
  func.func @transform_4(%arg0: i32) -> (i32, i32) {
    %c0_i32 = arith.constant 0 : i32
    %c0_i32_0 = arith.constant 0 : i32
    %c0_i32_1 = arith.constant 0 : i32
    return %c0_i32, %c0_i32_0 : i32, i32
  }
  func.func @transform_5(%arg0: i32) -> (i32, i32) {
    %c0_i32 = arith.constant 0 : i32
    %c0_i32_0 = arith.constant 0 : i32
    %c0_i32_1 = arith.constant 0 : i32
    return %c0_i32, %c0_i32_0 : i32, i32
  }
  func.func @transform_6(%arg0: i32) -> (i32, i32) {
    %c0_i32 = arith.constant 0 : i32
    %c0_i32_0 = arith.constant 0 : i32
    %c0_i32_1 = arith.constant 0 : i32
    return %c0_i32, %c0_i32_0 : i32, i32
  }
  func.func @transform_7(%arg0: i32) -> (i32, i32, i32) {
    %c0_i32 = arith.constant 0 : i32
    %c0_i32_0 = arith.constant 0 : i32
    %c0_i32_1 = arith.constant 0 : i32
    %c0_i32_2 = arith.constant 0 : i32
    return %c0_i32, %c0_i32_0, %c0_i32_1 : i32, i32, i32
  }
  func.func @transform_8(%arg0: i32) -> (i32, i32) {
    %c0_i32 = arith.constant 0 : i32
    %c0_i32_0 = arith.constant 0 : i32
    %c0_i32_1 = arith.constant 0 : i32
    return %c0_i32, %c0_i32_0 : i32, i32
  }
  func.func @transform_9(%arg0: i32) -> (i32, i32) {
    %c0_i32 = arith.constant 0 : i32
    %c0_i32_0 = arith.constant 0 : i32
    %c0_i32_1 = arith.constant 0 : i32
    return %c0_i32, %c0_i32_0 : i32, i32
  }
  func.func @transform_10(%arg0: i32) -> (i32, i32) {
    %c0_i32 = arith.constant 0 : i32
    %c0_i32_0 = arith.constant 0 : i32
    %c0_i32_1 = arith.constant 0 : i32
    return %c0_i32, %c0_i32_0 : i32, i32
  }
  func.func @transform_11(%arg0: i32) -> (i32, i32, i32) {
    %c0_i32 = arith.constant 0 : i32
    %c0_i32_0 = arith.constant 0 : i32
    %c0_i32_1 = arith.constant 0 : i32
    %c0_i32_2 = arith.constant 0 : i32
    return %c0_i32, %c0_i32_0, %c0_i32_1 : i32, i32, i32
  }
  func.func @transform_12(%arg0: i32) -> (i32, i32) {
    %c0_i32 = arith.constant 0 : i32
    %c0_i32_0 = arith.constant 0 : i32
    %c0_i32_1 = arith.constant 0 : i32
    return %c0_i32, %c0_i32_0 : i32, i32
  }
  func.func @transform_13(%arg0: i32) -> (i32, i32, i32) {
    %c0_i32 = arith.constant 0 : i32
    %c0_i32_0 = arith.constant 0 : i32
    %c0_i32_1 = arith.constant 0 : i32
    %c0_i32_2 = arith.constant 0 : i32
    return %c0_i32, %c0_i32_0, %c0_i32_1 : i32, i32, i32
  }
}

</mosaic_0001>

<llo_original>
// kernel: forward.1
$region0: #{forward.1}
  #allocation0 [shape = 'u32[]', space=smem, size = 0x4, offset = 0x4, fixed_abs, tag = 'smem constant byte address 0x4 - core index']
  #allocation1 [shape = 'u32[144,128]{1,0:T(1,128)}', space=vmem, size = 0x12000, scoped, tag = 'internal scratch']
  %s0 = inlined_call_operand.vmem [shape: bf16[20,256], index: 0, kind: input, shape index: {}]
  %s1 = inlined_call_operand.vmem [shape: bf16[256,32], index: 1, kind: input, shape index: {}]
  %s2 = inlined_call_operand.hbm [shape: f32[20,32], index: 2, kind: input, shape index: {}]
  %s3 = inlined_call_operand.hbm [shape: bf16[3,32,32], index: 3, kind: input, shape index: {}]
  %s4 = inlined_call_operand.vmem [shape: f32[1,32], index: 4, kind: input, shape index: {}]
  %s5 = inlined_call_operand.hbm [shape: bf16[32,64], index: 5, kind: input, shape index: {}]
  %s6 = inlined_call_operand.hbm [shape: bf16[36,18], index: 6, kind: input, shape index: {}]
  %s7 = inlined_call_operand.hbm [shape: bf16[3,64,64], index: 7, kind: input, shape index: {}]
  %s8 = inlined_call_operand.vmem [shape: f32[1,64], index: 8, kind: input, shape index: {}]
  %s9 = inlined_call_operand.hbm [shape: bf16[64,128], index: 9, kind: input, shape index: {}]
  %s10 = inlined_call_operand.hbm [shape: bf16[68,34], index: 10, kind: input, shape index: {}]
  %s11 = inlined_call_operand.vmem [shape: bf16[3,128,128], index: 11, kind: input, shape index: {}]
  %s12 = inlined_call_operand.vmem [shape: f32[1,128], index: 12, kind: input, shape index: {}]
  %s13 = inlined_call_operand.vmem [shape: f32[2,32,128], index: 13, kind: output, shape index: {}]
  %s14 = sld [smem:[#allocation0]]
  $region90: #{forward.1} parent=0
    _
  %s16 = ssub.s32 1, %s14
  %s17 = scalar_select 0, %s16, %s14
  $region1: #{forward.1} parent=0
    #allocation2 [shape = 'u8[12288]{0}', space=vmem, size = 0x3000, scoped, tag = 'input window, operand 2, single buffered']
    #allocation3 [shape = 's32[1]{0}', space=sflag, size = 0x4, scoped, tag = 'scoped memory for forward.1']
    #allocation4 [shape = 'u8[24576]{0}', space=vmem, size = 0x6000, scoped, tag = 'input window, operand 3, single buffered']
    #allocation5 [shape = 's32[1]{0}', space=sflag, size = 0x4, scoped, tag = 'scoped memory for forward.1']
    #allocation6 [shape = 'u8[8192]{0}', space=vmem, size = 0x2000, scoped, tag = 'input window, operand 5, single buffered']
    #allocation7 [shape = 'u8[10240]{0}', space=vmem, size = 0x2800, scoped, tag = 'input window, operand 6, single buffered']
    #allocation8 [shape = 's32[1]{0}', space=sflag, size = 0x4, scoped, tag = 'scoped memory for forward.1']
    #allocation9 [shape = 'u8[49152]{0}', space=vmem, size = 0xc000, scoped, tag = 'input window, operand 7, single buffered']
    #allocation10 [shape = 'u8[16384]{0}', space=vmem, size = 0x4000, scoped, tag = 'input window, operand 9, single buffered']
    #allocation11 [shape = 's32[1]{0}', space=sflag, size = 0x4, scoped, tag = 'scoped memory for forward.1']
    #allocation12 [shape = 'u8[18432]{0}', space=vmem, size = 0x4800, scoped, tag = 'input window, operand 10, single buffered']
    %18 = vsyncpa [#allocation3], 0
    %19 = vsyncpa [#allocation5], 0
    %20 = vsyncpa [#allocation8], 0
    %21 = vsyncpa [#allocation11], 0
    // Predicated region
    $region2: #{forward.1} parent=1 // pred_check
      _
    $region3: #{forward.1} parent=1 // pred_check_branch
      %23 = sbr.rel (0) target = $region5
    $region4: #{forward.1} parent=1 // pred_region
      _
    $region5: #{forward.1} parent=1 // pred_fallthru
      _
    // Predicated region
    $region6: #{forward.1} parent=1 // pred_check
      _
    $region7: #{forward.1} parent=1 // pred_check_branch
      %25 = sbr.rel (0) target = $region9
    $region8: #{forward.1} parent=1 // pred_region
      _
    $region9: #{forward.1} parent=1 // pred_fallthru
      _
    // Predicated region
    $region10: #{forward.1} parent=1 // pred_check
      _
    $region11: #{forward.1} parent=1 // pred_check_branch
      %27 = sbr.rel (0) target = $region13
    $region12: #{forward.1} parent=1 // pred_region
      %s29 = ssub.s32 384, 384
      %30 = vsyncadd [#allocation3], %s29
      %s31 = sshll.u32 [#allocation2], 4
      %s32 = int_to_ptr.vmem [resolvable:$true] %s31
      %37 = dma.hbm_to_vmem [thread:$0]  %s2, 384, %s32, [#allocation3], 128, 128, 8
    $region13: #{forward.1} parent=1 // pred_fallthru
      _
    // Predicated region
    $region14: #{forward.1} parent=1 // pred_check
      _
    $region15: #{forward.1} parent=1 // pred_check_branch
      %39 = sbr.rel (0) target = $region17
    $region16: #{forward.1} parent=1 // pred_region
      %s41 = ssub.s32 768, 768
      %42 = vsyncadd [#allocation5], %s41
      %s43 = sshll.u32 [#allocation4], 4
      %s44 = int_to_ptr.vmem [resolvable:$true] %s43
      %49 = dma.hbm_to_vmem [thread:$0]  %s3, 768, %s44, [#allocation5], 64, 64, 4
    $region17: #{forward.1} parent=1 // pred_fallthru
      _
    // Predicated region
    $region18: #{forward.1} parent=1 // pred_check
      _
    $region19: #{forward.1} parent=1 // pred_check_branch
      %51 = sbr.rel (0) target = $region21
    $region20: #{forward.1} parent=1 // pred_region
      _
    $region21: #{forward.1} parent=1 // pred_fallthru
      _
    // Predicated region
    $region22: #{forward.1} parent=1 // pred_check
      _
    $region23: #{forward.1} parent=1 // pred_check_branch
      %53 = sbr.rel (0) target = $region25
    $region24: #{forward.1} parent=1 // pred_region
      %s55 = ssub.s32 256, 256
      %56 = vsyncadd [#allocation5], %s55
      %s57 = sshll.u32 [#allocation6], 4
      %s58 = int_to_ptr.vmem [resolvable:$true] %s57
      %63 = dma.hbm_to_vmem [thread:$0]  %s5, 256, %s58, [#allocation5], 64, 64, 4
    $region25: #{forward.1} parent=1 // pred_fallthru
      _
    // Predicated region
    $region26: #{forward.1} parent=1 // pred_check
      _
    $region27: #{forward.1} parent=1 // pred_check_branch
      %65 = sbr.rel (0) target = $region29
    $region28: #{forward.1} parent=1 // pred_region
      %s67 = ssub.s32 320, 320
      %68 = vsyncadd [#allocation8], %s67
      %s69 = sshll.u32 [#allocation7], 4
      %s70 = int_to_ptr.vmem [resolvable:$true] %s69
      %75 = dma.hbm_to_vmem [thread:$0]  %s6, 320, %s70, [#allocation8], 64, 64, 4
    $region29: #{forward.1} parent=1 // pred_fallthru
      _
    // Predicated region
    $region30: #{forward.1} parent=1 // pred_check
      _
    $region31: #{forward.1} parent=1 // pred_check_branch
      %77 = sbr.rel (0) target = $region33
    $region32: #{forward.1} parent=1 // pred_region
      %s79 = ssub.s32 1536, 1536
      %80 = vsyncadd [#allocation8], %s79
      %s81 = sshll.u32 [#allocation9], 4
      %s82 = int_to_ptr.vmem [resolvable:$true] %s81
      %87 = dma.hbm_to_vmem [thread:$0]  %s7, 1536, %s82, [#allocation8], 64, 64, 4
    $region33: #{forward.1} parent=1 // pred_fallthru
      _
    // Predicated region
    $region34: #{forward.1} parent=1 // pred_check
      _
    $region35: #{forward.1} parent=1 // pred_check_branch
      %89 = sbr.rel (0) target = $region37
    $region36: #{forward.1} parent=1 // pred_region
      _
    $region37: #{forward.1} parent=1 // pred_fallthru
      _
    // Predicated region
    $region38: #{forward.1} parent=1 // pred_check
      _
    $region39: #{forward.1} parent=1 // pred_check_branch
      %91 = sbr.rel (0) target = $region41
    $region40: #{forward.1} parent=1 // pred_region
      %s93 = ssub.s32 512, 512
      %94 = vsyncadd [#allocation11], %s93
      %s95 = sshll.u32 [#allocation10], 4
      %s96 = int_to_ptr.vmem [resolvable:$true] %s95
      %101 = dma.hbm_to_vmem [thread:$0]  %s9, 512, %s96, [#allocation11], 64, 64, 4
    $region41: #{forward.1} parent=1 // pred_fallthru
      _
    // Predicated region
    $region42: #{forward.1} parent=1 // pred_check
      _
    $region43: #{forward.1} parent=1 // pred_check_branch
      %103 = sbr.rel (0) target = $region45
    $region44: #{forward.1} parent=1 // pred_region
      %s105 = ssub.s32 576, 576
      %106 = vsyncadd [#allocation11], %s105
      %s107 = sshll.u32 [#allocation12], 4
      %s108 = int_to_ptr.vmem [resolvable:$true] %s107
      %113 = dma.hbm_to_vmem [thread:$0]  %s10, 576, %s108, [#allocation11], 64, 64, 4
    $region45: #{forward.1} parent=1 // pred_fallthru
      _
    // Predicated region
    $region46: #{forward.1} parent=1 // pred_check
      _
    $region47: #{forward.1} parent=1 // pred_check_branch
      %115 = sbr.rel (0) target = $region49
    $region48: #{forward.1} parent=1 // pred_region
      _
    $region49: #{forward.1} parent=1 // pred_fallthru
      _
    // Predicated region
    $region50: #{forward.1} parent=1 // pred_check
      _
    $region51: #{forward.1} parent=1 // pred_check_branch
      %117 = sbr.rel (0) target = $region53
    $region52: #{forward.1} parent=1 // pred_region
      _
    $region53: #{forward.1} parent=1 // pred_fallthru
      _
    // Predicated region
    $region54: #{forward.1} parent=1 // pred_check
      _
    $region55: #{forward.1} parent=1 // pred_check_branch
      %119 = sbr.rel (0) target = $region57
    $region56: #{forward.1} parent=1 // pred_region
      %120 = dma.done [#allocation3], 384
    $region57: #{forward.1} parent=1 // pred_fallthru
      _
    // Predicated region
    $region58: #{forward.1} parent=1 // pred_check
      _
    $region59: #{forward.1} parent=1 // pred_check_branch
      %122 = sbr.rel (0) target = $region61
    $region60: #{forward.1} parent=1 // pred_region
      %123 = dma.done [#allocation5], 768
    $region61: #{forward.1} parent=1 // pred_fallthru
      _
    // Predicated region
    $region62: #{forward.1} parent=1 // pred_check
      _
    $region63: #{forward.1} parent=1 // pred_check_branch
      %125 = sbr.rel (0) target = $region65
    $region64: #{forward.1} parent=1 // pred_region
      %126 = dma.done [#allocation5], 256
    $region65: #{forward.1} parent=1 // pred_fallthru
      _
    // Predicated region
    $region66: #{forward.1} parent=1 // pred_check
      _
    $region67: #{forward.1} parent=1 // pred_check_branch
      %128 = sbr.rel (0) target = $region69
    $region68: #{forward.1} parent=1 // pred_region
      %129 = dma.done [#allocation8], 320
    $region69: #{forward.1} parent=1 // pred_fallthru
      _
    // Predicated region
    $region70: #{forward.1} parent=1 // pred_check
      _
    $region71: #{forward.1} parent=1 // pred_check_branch
      %131 = sbr.rel (0) target = $region73
    $region72: #{forward.1} parent=1 // pred_region
      %132 = dma.done [#allocation8], 1536
    $region73: #{forward.1} parent=1 // pred_fallthru
      _
    // Predicated region
    $region74: #{forward.1} parent=1 // pred_check
      _
    $region75: #{forward.1} parent=1 // pred_check_branch
      %134 = sbr.rel (0) target = $region77
    $region76: #{forward.1} parent=1 // pred_region
      %135 = dma.done [#allocation11], 512
    $region77: #{forward.1} parent=1 // pred_fallthru
      _
    // Predicated region
    $region78: #{forward.1} parent=1 // pred_check
      _
    $region79: #{forward.1} parent=1 // pred_check_branch
      %137 = sbr.rel (0) target = $region81
    $region80: #{forward.1} parent=1 // pred_region
      %138 = dma.done [#allocation11], 576
    $region81: #{forward.1} parent=1 // pred_fallthru
      _
    %v140 = vld [vmem:[%s0] sm:$0xff]
    %v141 = vld [vmem:[%s0 + $0x8] sm:$0xff]
    %v142 = vld [vmem:[%s0 + $0x10] sm:$0x33]
    %v143 = vld [vmem:[%s1] sm:$0xf]
    %v144 = vld [vmem:[%s1 + $0x4] sm:$0xf]
    %v145 = vld [vmem:[%s1 + $0x8] sm:$0xf]
    %v146 = vld [vmem:[%s1 + $0xc] sm:$0xf]
    %v147 = vld [vmem:[%s1 + $0x10] sm:$0xf]
    %v148 = vld [vmem:[%s1 + $0x14] sm:$0xf]
    %v149 = vld [vmem:[%s1 + $0x18] sm:$0xf]
    %v150 = vld [vmem:[%s1 + $0x1c] sm:$0xf]
    %v151 = vld [vmem:[%s1 + $0x20] sm:$0xf]
    %v152 = vld [vmem:[%s1 + $0x24] sm:$0xf]
    %v153 = vld [vmem:[%s1 + $0x28] sm:$0xf]
    %v154 = vld [vmem:[%s1 + $0x2c] sm:$0xf]
    %v155 = vld [vmem:[%s1 + $0x30] sm:$0xf]
    %v156 = vld [vmem:[%s1 + $0x34] sm:$0xf]
    %v157 = vld [vmem:[%s1 + $0x38] sm:$0xf]
    %v158 = vld [vmem:[%s1 + $0x3c] sm:$0xf]
    %v159 = vld [vmem:[%s1 + $0x40] sm:$0xf]
    %v160 = vld [vmem:[%s1 + $0x44] sm:$0xf]
    %v161 = vld [vmem:[%s1 + $0x48] sm:$0xf]
    %v162 = vld [vmem:[%s1 + $0x4c] sm:$0xf]
    %v163 = vld [vmem:[%s1 + $0x50] sm:$0xf]
    %v164 = vld [vmem:[%s1 + $0x54] sm:$0xf]
    %v165 = vld [vmem:[%s1 + $0x58] sm:$0xf]
    %v166 = vld [vmem:[%s1 + $0x5c] sm:$0xf]
    %v167 = vld [vmem:[%s1 + $0x60] sm:$0xf]
    %v168 = vld [vmem:[%s1 + $0x64] sm:$0xf]
    %v169 = vld [vmem:[%s1 + $0x68] sm:$0xf]
    %v170 = vld [vmem:[%s1 + $0x6c] sm:$0xf]
    %v171 = vld [vmem:[%s1 + $0x70] sm:$0xf]
    %v172 = vld [vmem:[%s1 + $0x74] sm:$0xf]
    %v173 = vld [vmem:[%s1 + $0x78] sm:$0xf]
    %v174 = vld [vmem:[%s1 + $0x7c] sm:$0xf]
    %v175 = vld [vmem:[#allocation2] sm:$0xff]
    %v176 = vld [vmem:[#allocation2 + $0x8] sm:$0xff]
    %v177 = vld [vmem:[#allocation2 + $0x10] sm:$0xf]
    %v181 = vunpack.c.l.b16 %v140
    %v182 = vunpack.c.h.b16 %v140
    %v183 = vunpack.c.l.b16 %v141
    %v184 = vunpack.c.h.b16 %v141
    %v185 = vunpack.c.l.b16 %v142
    %v186 = vunpack.c.h.b16 %v142
    %v187 = vpack.c.b16 %v183, %v181
    %v188 = vpack.c.b16 %v184, %v182
    %v189 = vpack.c.b16 %v185, %v185
    %v190 = vpack.c.b16 %v186, %v186
    %v227 = vunpack.c.l.b16 %v143
    %v228 = vunpack.c.l.b16 %v144
    %v229 = vunpack.c.l.b16 %v145
    %v230 = vunpack.c.l.b16 %v146
    %v231 = vunpack.c.l.b16 %v147
    %v232 = vunpack.c.l.b16 %v148
    %v233 = vunpack.c.l.b16 %v149
    %v234 = vunpack.c.l.b16 %v150
    %v235 = vunpack.c.l.b16 %v151
    %v236 = vunpack.c.l.b16 %v152
    %v237 = vunpack.c.l.b16 %v153
    %v238 = vunpack.c.l.b16 %v154
    %v239 = vunpack.c.l.b16 %v155
    %v240 = vunpack.c.l.b16 %v156
    %v241 = vunpack.c.l.b16 %v157
    %v242 = vunpack.c.l.b16 %v158
    %v243 = vunpack.c.l.b16 %v159
    %v244 = vunpack.c.l.b16 %v160
    %v245 = vunpack.c.l.b16 %v161
    %v246 = vunpack.c.l.b16 %v162
    %v247 = vunpack.c.l.b16 %v163
    %v248 = vunpack.c.l.b16 %v164
    %v249 = vunpack.c.l.b16 %v165
    %v250 = vunpack.c.l.b16 %v166
    %v251 = vunpack.c.l.b16 %v167
    %v252 = vunpack.c.l.b16 %v168
    %v253 = vunpack.c.l.b16 %v169
    %v254 = vunpack.c.l.b16 %v170
    %v255 = vunpack.c.l.b16 %v171
    %v256 = vunpack.c.l.b16 %v172
    %v257 = vunpack.c.l.b16 %v173
    %v258 = vunpack.c.l.b16 %v174
    %v259 = vpack.c.b16 %v228, %v227
    %v260 = vpack.c.b16 %v230, %v229
    %v261 = vpack.c.b16 %v232, %v231
    %v262 = vpack.c.b16 %v234, %v233
    %v263 = vpack.c.b16 %v236, %v235
    %v264 = vpack.c.b16 %v238, %v237
    %v265 = vpack.c.b16 %v240, %v239
    %v266 = vpack.c.b16 %v242, %v241
    %v267 = vpack.c.b16 %v244, %v243
    %v268 = vpack.c.b16 %v246, %v245
    %v269 = vpack.c.b16 %v248, %v247
    %v270 = vpack.c.b16 %v250, %v249
    %v271 = vpack.c.b16 %v252, %v251
    %v272 = vpack.c.b16 %v254, %v253
    %v273 = vpack.c.b16 %v256, %v255
    %v274 = vpack.c.b16 %v258, %v257
    %291 = vmatprep.subr.bf16.mxu0 0
    %292 = vmatpush1.bf16.msra.mxu0 %v259
    %293 = vmatprep.subr.bf16.mxu0 0
    %294 = vmatpush1.bf16.msra.mxu0 %v260
    %295 = vmatprep.subr.bf16.mxu0 0
    %296 = vmatpush1.bf16.msra.mxu0 %v261
    %297 = vmatprep.subr.bf16.mxu0 0
    %298 = vmatpush1.bf16.msra.mxu0 %v262
    %299 = vmatprep.subr.bf16.mxu0 0
    %300 = vmatpush1.bf16.msra.mxu0 %v263
    %301 = vmatprep.subr.bf16.mxu0 0
    %302 = vmatpush1.bf16.msra.mxu0 %v264
    %303 = vmatprep.subr.bf16.mxu0 0
    %304 = vmatpush1.bf16.msra.mxu0 %v265
    %305 = vmatprep.subr.bf16.mxu0 0
    %306 = vmatpush1.bf16.msra.mxu0 %v266
    %307 = vmatprep.subr.bf16.mxu0 0
    %308 = vmatpush1.bf16.msra.mxu0 %v267
    %309 = vmatprep.subr.bf16.mxu0 0
    %310 = vmatpush1.bf16.msra.mxu0 %v268
    %311 = vmatprep.subr.bf16.mxu0 0
    %312 = vmatpush1.bf16.msra.mxu0 %v269
    %313 = vmatprep.subr.bf16.mxu0 0
    %314 = vmatpush1.bf16.msra.mxu0 %v270
    %315 = vmatprep.subr.bf16.mxu0 0
    %316 = vmatpush1.bf16.msra.mxu0 %v271
    %317 = vmatprep.subr.bf16.mxu0 0
    %318 = vmatpush1.bf16.msra.mxu0 %v272
    %319 = vmatprep.subr.bf16.mxu0 0
    %320 = vmatpush1.bf16.msra.mxu0 %v273
    %321 = vmatprep.subr.bf16.mxu0 0
    %322 = vmatpush1.bf16.msra.mxu0 %v274
    %323 = vmatprep.mubr.bf16.mxu0 %v188
    %324 = vmatmul.mubr.bf16.gmra.mrb[0].mxu0 %v187
    %v325 = vpop.f32.mrb[0].mxu0
    %v326 = vadd.f32 %v175, %v325
    %v327 = vpop.f32.mrb[0].mxu0
    %v328 = vpop.f32.mrb[0].mxu0
    %v329 = vadd.f32 %v176, %v328
    %v330 = vpop.f32.mrb[0].mxu0
    %331 = vmatprep.mubr.bf16.mxu0 %v190
    %332 = vmatmul.mubr.bf16.gmra.mrb[0].mxu0 %v189
    %v333 = vpop.f32.mrb[0].mxu0
    %v334 = vadd.f32 %v177, %v333
    %v335 = vpop.f32.mrb[0].mxu0
    %v336 = vpop.f32.mrb[0].mxu0
    %v337 = vpop.f32.mrb[0].mxu0
    %338 = vdwg.mxu0
    %v339 = vmax.f32 %v326, 0.0
    %v340 = vmax.f32 %v329, 0.0
    %v341 = vmax.f32 %v334, 0.0
    %v342 = vpack.c.bf16 %v340, %v339
    %v343 = vpack.c.bf16 %v341, %v341
    %v344 = vld [vmem:[#allocation4] sm:$0xf]
    %v345 = vld [vmem:[#allocation4 + $0x4] sm:$0xf]
    %v346 = vld [vmem:[#allocation4 + $0x8] sm:$0xf]
    %v347 = vld [vmem:[#allocation4 + $0xc] sm:$0xf]
    %s348 = scalar_lea.vmem [#allocation4], 16
    %v349 = vld [vmem:[%s348] sm:$0xf]
    %v350 = vld [vmem:[%s348 + $0x4] sm:$0xf]
    %v351 = vld [vmem:[%s348 + $0x8] sm:$0xf]
    %v352 = vld [vmem:[%s348 + $0xc] sm:$0xf]
    %vm353 = vsmask.f32 7424
    %v355 = vshrl.u32 %v342, 16
    %v357 = vshll.u32 %v342, 16
    %v359 = vrot.slane %v357, 1
    %v360 = vor.u32 %v355, %v359
    %v362 = vshll.u32 %v343, 16
    %v364 = vrot.slane %v362, 1
    %v365 = vsel %vm353, %v360, %v364
    %v366 = vshrl.u32 %v343, 16
    %v368 = vor.u32 %v366, %v364
    %v373 = vunpack.c.l.b16 %v349
    %v374 = vunpack.c.l.b16 %v350
    %v375 = vunpack.c.l.b16 %v351
    %v376 = vunpack.c.l.b16 %v352
    %v377 = vpack.c.b16 %v374, %v373
    %v378 = vpack.c.b16 %v376, %v375
    %vm381 = vcmask 261120
    %v383 = vsel %vm381, %v365, 0
    %v386 = vsel %vm381, %v368, 0
    %388 = vmatprep.subr.bf16.mxu0 0
    %389 = vmatpush1.bf16.msra.mxu0 %v377
    %390 = vmatprep.subr.bf16.mxu0 0
    %391 = vmatpush1.bf16.msra.mxu0 %v378
    %392 = vmatprep.subr.bf16.mxu0 0
    %393 = vmatpush1.bf16.msra.mxu0 0
    %394 = vmatprep.subr.bf16.mxu0 0
    %395 = vmatpush1.bf16.msra.mxu0 0
    %396 = vmatprep.subr.bf16.mxu0 0
    %397 = vmatpush1.bf16.msra.mxu0 0
    %398 = vmatprep.subr.bf16.mxu0 0
    %399 = vmatpush1.bf16.msra.mxu0 0
    %400 = vmatprep.subr.bf16.mxu0 0
    %401 = vmatpush1.bf16.msra.mxu0 0
    %402 = vmatprep.subr.bf16.mxu0 0
    %403 = vmatpush1.bf16.msra.mxu0 0
    %404 = vmatprep.subr.bf16.mxu0 0
    %405 = vmatpush1.bf16.msra.mxu0 0
    %406 = vmatprep.subr.bf16.mxu0 0
    %407 = vmatpush1.bf16.msra.mxu0 0
    %408 = vmatprep.subr.bf16.mxu0 0
    %409 = vmatpush1.bf16.msra.mxu0 0
    %410 = vmatprep.subr.bf16.mxu0 0
    %411 = vmatpush1.bf16.msra.mxu0 0
    %412 = vmatprep.subr.bf16.mxu0 0
    %413 = vmatpush1.bf16.msra.mxu0 0
    %414 = vmatprep.subr.bf16.mxu0 0
    %415 = vmatpush1.bf16.msra.mxu0 0
    %416 = vmatprep.subr.bf16.mxu0 0
    %417 = vmatpush1.bf16.msra.mxu0 0
    %418 = vmatprep.subr.bf16.mxu0 0
    %419 = vmatpush1.bf16.msra.mxu0 0
    %420 = vmatprep.mubr.bf16.mxu0 0
    %421 = vmatmul.mubr.bf16.gmra.mrb[0].mxu0 %v383
    %v422 = vpop.f32.mrb[0].mxu0
    %v423 = vadd.f32 0.0, %v422
    %v424 = vpop.f32.mrb[0].mxu0
    %v425 = vpop.f32.mrb[0].mxu0
    %v426 = vadd.f32 0.0, %v425
    %v427 = vpop.f32.mrb[0].mxu0
    %428 = vmatprep.mubr.bf16.mxu0 0
    %429 = vmatmul.mubr.bf16.gmra.mrb[0].mxu0 %v386
    %v430 = vpop.f32.mrb[0].mxu0
    %v431 = vadd.f32 0.0, %v430
    %v432 = vpop.f32.mrb[0].mxu0
    %v433 = vpop.f32.mrb[0].mxu0
    %v434 = vpop.f32.mrb[0].mxu0
    %435 = vdwg.mxu0
    %v440 = vunpack.c.l.b16 %v344
    %v441 = vunpack.c.l.b16 %v345
    %v442 = vunpack.c.l.b16 %v346
    %v443 = vunpack.c.l.b16 %v347
    %v444 = vpack.c.b16 %v441, %v440
    %v445 = vpack.c.b16 %v443, %v442
    %v448 = vsel %vm381, %v342, 0
    %v450 = vsel %vm381, %v343, 0
    %452 = vmatprep.subr.bf16.mxu0 0
    %453 = vmatpush1.bf16.msra.mxu0 %v444
    %454 = vmatprep.subr.bf16.mxu0 0
    %455 = vmatpush1.bf16.msra.mxu0 %v445
    %456 = vmatprep.subr.bf16.mxu0 0
    %457 = vmatpush1.bf16.msra.mxu0 0
    %458 = vmatprep.subr.bf16.mxu0 0
    %459 = vmatpush1.bf16.msra.mxu0 0
    %460 = vmatprep.subr.bf16.mxu0 0
    %461 = vmatpush1.bf16.msra.mxu0 0
    %462 = vmatprep.subr.bf16.mxu0 0
    %463 = vmatpush1.bf16.msra.mxu0 0
    %464 = vmatprep.subr.bf16.mxu0 0
    %465 = vmatpush1.bf16.msra.mxu0 0
    %466 = vmatprep.subr.bf16.mxu0 0
    %467 = vmatpush1.bf16.msra.mxu0 0
    %468 = vmatprep.subr.bf16.mxu0 0
    %469 = vmatpush1.bf16.msra.mxu0 0
    %470 = vmatprep.subr.bf16.mxu0 0
    %471 = vmatpush1.bf16.msra.mxu0 0
    %472 = vmatprep.subr.bf16.mxu0 0
    %473 = vmatpush1.bf16.msra.mxu0 0
    %474 = vmatprep.subr.bf16.mxu0 0
    %475 = vmatpush1.bf16.msra.mxu0 0
    %476 = vmatprep.subr.bf16.mxu0 0
    %477 = vmatpush1.bf16.msra.mxu0 0
    %478 = vmatprep.subr.bf16.mxu0 0
    %479 = vmatpush1.bf16.msra.mxu0 0
    %480 = vmatprep.subr.bf16.mxu0 0
    %481 = vmatpush1.bf16.msra.mxu0 0
    %482 = vmatprep.subr.bf16.mxu0 0
    %483 = vmatpush1.bf16.msra.mxu0 0
    %484 = vmatprep.mubr.bf16.mxu0 0
    %485 = vmatmul.mubr.bf16.gmra.mrb[0].mxu0 %v448
    %v486 = vpop.f32.mrb[0].mxu0
    %v487 = vadd.f32 %v423, %v486
    %v488 = vpop.f32.mrb[0].mxu0
    %v489 = vpop.f32.mrb[0].mxu0
    %v490 = vadd.f32 %v426, %v489
    %v491 = vpop.f32.mrb[0].mxu0
    %492 = vmatprep.mubr.bf16.mxu0 0
    %493 = vmatmul.mubr.bf16.gmra.mrb[0].mxu0 %v450
    %v494 = vpop.f32.mrb[0].mxu0
    %v495 = vadd.f32 %v431, %v494
    %v496 = vpop.f32.mrb[0].mxu0
    %v497 = vpop.f32.mrb[0].mxu0
    %v498 = vpop.f32.mrb[0].mxu0
    %499 = vdwg.mxu0
    %s500 = scalar_lea.vmem [#allocation4], 32
    %v501 = vld [vmem:[%s500] sm:$0xf]
    %v502 = vld [vmem:[%s500 + $0x4] sm:$0xf]
    %v503 = vld [vmem:[%s500 + $0x8] sm:$0xf]
    %v504 = vld [vmem:[%s500 + $0xc] sm:$0xf]
    %vm507 = vcmask 1046528
    %v508 = vrot.slane %v342, 1
    %v509 = vrot.slane %v343, 1
    %v510 = vsel %vm507, %v508, %v509
    %v515 = vunpack.c.l.b16 %v501
    %v516 = vunpack.c.l.b16 %v502
    %v517 = vunpack.c.l.b16 %v503
    %v518 = vunpack.c.l.b16 %v504
    %v519 = vpack.c.b16 %v516, %v515
    %v520 = vpack.c.b16 %v518, %v517
    %v524 = vsel %vm381, %v510, 0
    %v527 = vsel %vm381, %v509, 0
    %529 = vmatprep.subr.bf16.mxu0 0
    %530 = vmatpush1.bf16.msra.mxu0 %v519
    %531 = vmatprep.subr.bf16.mxu0 0
    %532 = vmatpush1.bf16.msra.mxu0 %v520
    %533 = vmatprep.subr.bf16.mxu0 0
    %534 = vmatpush1.bf16.msra.mxu0 0
    %535 = vmatprep.subr.bf16.mxu0 0
    %536 = vmatpush1.bf16.msra.mxu0 0
    %537 = vmatprep.subr.bf16.mxu0 0
    %538 = vmatpush1.bf16.msra.mxu0 0
    %539 = vmatprep.subr.bf16.mxu0 0
    %540 = vmatpush1.bf16.msra.mxu0 0
    %541 = vmatprep.subr.bf16.mxu0 0
    %542 = vmatpush1.bf16.msra.mxu0 0
    %543 = vmatprep.subr.bf16.mxu0 0
    %544 = vmatpush1.bf16.msra.mxu0 0
    %545 = vmatprep.subr.bf16.mxu0 0
    %546 = vmatpush1.bf16.msra.mxu0 0
    %547 = vmatprep.subr.bf16.mxu0 0
    %548 = vmatpush1.bf16.msra.mxu0 0
    %549 = vmatprep.subr.bf16.mxu0 0
    %550 = vmatpush1.bf16.msra.mxu0 0
    %551 = vmatprep.subr.bf16.mxu0 0
    %552 = vmatpush1.bf16.msra.mxu0 0
    %553 = vmatprep.subr.bf16.mxu0 0
    %554 = vmatpush1.bf16.msra.mxu0 0
    %555 = vmatprep.subr.bf16.mxu0 0
    %556 = vmatpush1.bf16.msra.mxu0 0
    %557 = vmatprep.subr.bf16.mxu0 0
    %558 = vmatpush1.bf16.msra.mxu0 0
    %559 = vmatprep.subr.bf16.mxu0 0
    %560 = vmatpush1.bf16.msra.mxu0 0
    %561 = vmatprep.mubr.bf16.mxu0 0
    %562 = vmatmul.mubr.bf16.gmra.mrb[0].mxu0 %v524
    %v563 = vpop.f32.mrb[0].mxu0
    %v564 = vadd.f32 0.0, %v563
    %v565 = vpop.f32.mrb[0].mxu0
    %v566 = vpop.f32.mrb[0].mxu0
    %v567 = vadd.f32 0.0, %v566
    %v568 = vpop.f32.mrb[0].mxu0
    %569 = vmatprep.mubr.bf16.mxu0 0
    %570 = vmatmul.mubr.bf16.gmra.mrb[0].mxu0 %v527
    %v571 = vpop.f32.mrb[0].mxu0
    %v572 = vadd.f32 0.0, %v571
    %v573 = vpop.f32.mrb[0].mxu0
    %v574 = vpop.f32.mrb[0].mxu0
    %v575 = vpop.f32.mrb[0].mxu0
    %576 = vdwg.mxu0
    %v577 = vadd.f32 %v487, %v564
    %v578 = vadd.f32 %v490, %v567
    %v579 = vadd.f32 %v495, %v572
    %v580 = vld [vmem:[%s4] sm:$0x1]
    %v582 = vlaneseq
    %v583 = vshrl.u32 %v582, 7
    %v584 = vsub.s32 0, %v583
    %v585 = vrot.slane %v580, %v584
    %v587 = vadd.f32 %v577, %v585
    %v588 = vadd.f32 %v578, %v585
    %v589 = vadd.f32 %v579, %v585
    %v590 = vmax.f32 %v587, 0.0
    %v591 = vmax.f32 %v588, 0.0
    %v592 = vmax.f32 %v589, 0.0
    %v593 = vpack.c.bf16 %v591, %v590
    %v594 = vpack.c.bf16 %v592, %v592
    %v595 = vld [vmem:[#allocation6] sm:$0xf]
    %v596 = vld [vmem:[#allocation6 + $0x4] sm:$0xf]
    %v597 = vld [vmem:[#allocation6 + $0x8] sm:$0xf]
    %v598 = vld [vmem:[#allocation6 + $0xc] sm:$0xf]
    %v603 = vunpack.c.l.b16 %v595
    %v604 = vunpack.c.l.b16 %v596
    %v605 = vunpack.c.l.b16 %v597
    %v606 = vunpack.c.l.b16 %v598
    %v607 = vpack.c.b16 %v604, %v603
    %v608 = vpack.c.b16 %v606, %v605
    %v612 = vsel %vm381, %v593, 0
    %v615 = vsel %vm381, %v594, 0
    %617 = vmatprep.subr.bf16.mxu0 0
    %618 = vmatpush1.bf16.msra.mxu0 %v607
    %619 = vmatprep.subr.bf16.mxu0 0
    %620 = vmatpush1.bf16.msra.mxu0 %v608
    %621 = vmatprep.subr.bf16.mxu0 0
    %622 = vmatpush1.bf16.msra.mxu0 0
    %623 = vmatprep.subr.bf16.mxu0 0
    %624 = vmatpush1.bf16.msra.mxu0 0
    %625 = vmatprep.subr.bf16.mxu0 0
    %626 = vmatpush1.bf16.msra.mxu0 0
    %627 = vmatprep.subr.bf16.mxu0 0
    %628 = vmatpush1.bf16.msra.mxu0 0
    %629 = vmatprep.subr.bf16.mxu0 0
    %630 = vmatpush1.bf16.msra.mxu0 0
    %631 = vmatprep.subr.bf16.mxu0 0
    %632 = vmatpush1.bf16.msra.mxu0 0
    %633 = vmatprep.subr.bf16.mxu0 0
    %634 = vmatpush1.bf16.msra.mxu0 0
    %635 = vmatprep.subr.bf16.mxu0 0
    %636 = vmatpush1.bf16.msra.mxu0 0
    %637 = vmatprep.subr.bf16.mxu0 0
    %638 = vmatpush1.bf16.msra.mxu0 0
    %639 = vmatprep.subr.bf16.mxu0 0
    %640 = vmatpush1.bf16.msra.mxu0 0
    %641 = vmatprep.subr.bf16.mxu0 0
    %642 = vmatpush1.bf16.msra.mxu0 0
    %643 = vmatprep.subr.bf16.mxu0 0
    %644 = vmatpush1.bf16.msra.mxu0 0
    %645 = vmatprep.subr.bf16.mxu0 0
    %646 = vmatpush1.bf16.msra.mxu0 0
    %647 = vmatprep.subr.bf16.mxu0 0
    %648 = vmatpush1.bf16.msra.mxu0 0
    %649 = vmatprep.mubr.bf16.mxu0 0
    %650 = vmatmul.mubr.bf16.gmra.mrb[0].mxu0 %v612
    %v651 = vpop.f32.mrb[0].mxu0
    %v652 = vadd.f32 0.0, %v651
    %v653 = vpop.f32.mrb[0].mxu0
    %v654 = vpop.f32.mrb[0].mxu0
    %v655 = vadd.f32 0.0, %v654
    %v656 = vpop.f32.mrb[0].mxu0
    %657 = vmatprep.mubr.bf16.mxu0 0
    %658 = vmatmul.mubr.bf16.gmra.mrb[0].mxu0 %v615
    %v659 = vpop.f32.mrb[0].mxu0
    %v660 = vadd.f32 0.0, %v659
    %v661 = vpop.f32.mrb[0].mxu0
    %v662 = vpop.f32.mrb[0].mxu0
    %v663 = vpop.f32.mrb[0].mxu0
    %664 = vdwg.mxu0
    %v665 = vld [vmem:[#allocation7] sm:$0xf]
    %v666 = vld [vmem:[#allocation7 + $0x4] sm:$0xf]
    %v667 = vld [vmem:[#allocation7 + $0x8] sm:$0xf]
    %v668 = vld [vmem:[#allocation7 + $0xc] sm:$0xf]
    %v669 = vld [vmem:[#allocation7 + $0x10] sm:$0x3]
    %v670 = vpack.c.bf16 %v655, %v652
    %v671 = vpack.c.bf16 %v660, %v660
    %v677 = vunpack.c.l.b16 %v665
    %v678 = vunpack.c.l.b16 %v666
    %v679 = vunpack.c.l.b16 %v667
    %v680 = vunpack.c.l.b16 %v668
    %v681 = vunpack.c.l.b16 %v669
    %v682 = vpack.c.b16 %v678, %v677
    %v683 = vpack.c.b16 %v680, %v679
    %v684 = vpack.c.b16 %v681, %v681
    %vm685 = vcmask 146432
    %v687 = vsel %vm685, %v682, 0
    %v690 = vsel %vm685, %v683, 0
    %v693 = vsel %vm685, %v684, 0
    %vm695 = vcmask 1040384
    %v697 = vsel %vm695, %v671, 0
    %699 = vmatprep.subr.bf16.mxu0 0
    %700 = vmatpush1.bf16.msra.mxu0 %v670
    %701 = vmatprep.subr.bf16.mxu0 0
    %702 = vmatpush1.bf16.msra.mxu0 %v697
    %703 = vmatprep.subr.bf16.mxu0 0
    %704 = vmatpush1.bf16.msra.mxu0 0
    %705 = vmatprep.subr.bf16.mxu0 0
    %706 = vmatpush1.bf16.msra.mxu0 0
    %707 = vmatprep.subr.bf16.mxu0 0
    %708 = vmatpush1.bf16.msra.mxu0 0
    %709 = vmatprep.subr.bf16.mxu0 0
    %710 = vmatpush1.bf16.msra.mxu0 0
    %711 = vmatprep.subr.bf16.mxu0 0
    %712 = vmatpush1.bf16.msra.mxu0 0
    %713 = vmatprep.subr.bf16.mxu0 0
    %714 = vmatpush1.bf16.msra.mxu0 0
    %715 = vmatprep.subr.bf16.mxu0 0
    %716 = vmatpush1.bf16.msra.mxu0 0
    %717 = vmatprep.subr.bf16.mxu0 0
    %718 = vmatpush1.bf16.msra.mxu0 0
    %719 = vmatprep.subr.bf16.mxu0 0
    %720 = vmatpush1.bf16.msra.mxu0 0
    %721 = vmatprep.subr.bf16.mxu0 0
    %722 = vmatpush1.bf16.msra.mxu0 0
    %723 = vmatprep.subr.bf16.mxu0 0
    %724 = vmatpush1.bf16.msra.mxu0 0
    %725 = vmatprep.subr.bf16.mxu0 0
    %726 = vmatpush1.bf16.msra.mxu0 0
    %727 = vmatprep.subr.bf16.mxu0 0
    %728 = vmatpush1.bf16.msra.mxu0 0
    %729 = vmatprep.subr.bf16.mxu0 0
    %730 = vmatpush1.bf16.msra.mxu0 0
    %731 = vmatprep.mubr.bf16.mxu0 0
    %732 = vmatmul.mubr.bf16.gmra.mrb[0].mxu0 %v687
    %v733 = vpop.f32.mrb[0].mxu0
    %v734 = vadd.f32 0.0, %v733
    %v735 = vpop.f32.mrb[0].mxu0
    %v736 = vpop.f32.mrb[0].mxu0
    %v737 = vadd.f32 0.0, %v736
    %v738 = vpop.f32.mrb[0].mxu0
    %739 = vmatprep.mubr.bf16.mxu0 0
    %740 = vmatmul.mubr.bf16.gmra.mrb[0].mxu0 %v690
    %v741 = vpop.f32.mrb[0].mxu0
    %v742 = vadd.f32 0.0, %v741
    %v743 = vpop.f32.mrb[0].mxu0
    %v744 = vpop.f32.mrb[0].mxu0
    %v745 = vadd.f32 0.0, %v744
    %v746 = vpop.f32.mrb[0].mxu0
    %747 = vmatprep.mubr.bf16.mxu0 0
    %748 = vmatmul.mubr.bf16.gmra.mrb[0].mxu0 %v693
    %v749 = vpop.f32.mrb[0].mxu0
    %v750 = vadd.f32 0.0, %v749
    %v751 = vpop.f32.mrb[0].mxu0
    %v752 = vpop.f32.mrb[0].mxu0
    %v753 = vpop.f32.mrb[0].mxu0
    %754 = vdwg.mxu0
    %v755 = vpack.c.bf16 %v737, %v734
    %v756 = vpack.c.bf16 %v745, %v742
    %v757 = vpack.c.bf16 %v750, %v750
    %v758 = vld [vmem:[#allocation9] sm:$0xf]
    %v759 = vld [vmem:[#allocation9 + $0x4] sm:$0xf]
    %v760 = vld [vmem:[#allocation9 + $0x8] sm:$0xf]
    %v761 = vld [vmem:[#allocation9 + $0xc] sm:$0xf]
    %v762 = vld [vmem:[#allocation9 + $0x10] sm:$0xf]
    %v763 = vld [vmem:[#allocation9 + $0x14] sm:$0xf]
    %v764 = vld [vmem:[#allocation9 + $0x18] sm:$0xf]
    %v765 = vld [vmem:[#allocation9 + $0x1c] sm:$0xf]
    %s766 = scalar_lea.vmem [#allocation9], 32
    %v767 = vld [vmem:[%s766] sm:$0xf]
    %v768 = vld [vmem:[%s766 + $0x4] sm:$0xf]
    %v769 = vld [vmem:[%s766 + $0x8] sm:$0xf]
    %v770 = vld [vmem:[%s766 + $0xc] sm:$0xf]
    %v771 = vld [vmem:[%s766 + $0x10] sm:$0xf]
    %v772 = vld [vmem:[%s766 + $0x14] sm:$0xf]
    %v773 = vld [vmem:[%s766 + $0x18] sm:$0xf]
    %v774 = vld [vmem:[%s766 + $0x1c] sm:$0xf]
    %v776 = vshrl.u32 %v755, 16
    %v778 = vshll.u32 %v755, 16
    %v780 = vrot.slane %v778, 1
    %v781 = vor.u32 %v776, %v780
    %v783 = vshll.u32 %v756, 16
    %v785 = vrot.slane %v783, 1
    %v786 = vsel %vm353, %v781, %v785
    %v787 = vshrl.u32 %v756, 16
    %v789 = vor.u32 %v787, %v785
    %v791 = vshll.u32 %v757, 16
    %v793 = vrot.slane %v791, 1
    %v794 = vsel %vm353, %v789, %v793
    %v795 = vshrl.u32 %v757, 16
    %v797 = vor.u32 %v795, %v793
    %v806 = vunpack.c.l.b16 %v767
    %v807 = vunpack.c.l.b16 %v768
    %v808 = vunpack.c.l.b16 %v769
    %v809 = vunpack.c.l.b16 %v770
    %v810 = vunpack.c.l.b16 %v771
    %v811 = vunpack.c.l.b16 %v772
    %v812 = vunpack.c.l.b16 %v773
    %v813 = vunpack.c.l.b16 %v774
    %v814 = vpack.c.b16 %v807, %v806
    %v815 = vpack.c.b16 %v809, %v808
    %v816 = vpack.c.b16 %v811, %v810
    %v817 = vpack.c.b16 %v813, %v812
    %vm822 = vcmask 523264
    %v824 = vsel %vm822, %v786, 0
    %v827 = vsel %vm822, %v794, 0
    %v830 = vsel %vm822, %v797, 0
    %832 = vmatprep.subr.bf16.mxu0 0
    %833 = vmatpush1.bf16.msra.mxu0 %v814
    %834 = vmatprep.subr.bf16.mxu0 0
    %835 = vmatpush1.bf16.msra.mxu0 %v815
    %836 = vmatprep.subr.bf16.mxu0 0
    %837 = vmatpush1.bf16.msra.mxu0 %v816
    %838 = vmatprep.subr.bf16.mxu0 0
    %839 = vmatpush1.bf16.msra.mxu0 %v817
    %840 = vmatprep.subr.bf16.mxu0 0
    %841 = vmatpush1.bf16.msra.mxu0 0
    %842 = vmatprep.subr.bf16.mxu0 0
    %843 = vmatpush1.bf16.msra.mxu0 0
    %844 = vmatprep.subr.bf16.mxu0 0
    %845 = vmatpush1.bf16.msra.mxu0 0
    %846 = vmatprep.subr.bf16.mxu0 0
    %847 = vmatpush1.bf16.msra.mxu0 0
    %848 = vmatprep.subr.bf16.mxu0 0
    %849 = vmatpush1.bf16.msra.mxu0 0
    %850 = vmatprep.subr.bf16.mxu0 0
    %851 = vmatpush1.bf16.msra.mxu0 0
    %852 = vmatprep.subr.bf16.mxu0 0
    %853 = vmatpush1.bf16.msra.mxu0 0
    %854 = vmatprep.subr.bf16.mxu0 0
    %855 = vmatpush1.bf16.msra.mxu0 0
    %856 = vmatprep.subr.bf16.mxu0 0
    %857 = vmatpush1.bf16.msra.mxu0 0
    %858 = vmatprep.subr.bf16.mxu0 0
    %859 = vmatpush1.bf16.msra.mxu0 0
    %860 = vmatprep.subr.bf16.mxu0 0
    %861 = vmatpush1.bf16.msra.mxu0 0
    %862 = vmatprep.subr.bf16.mxu0 0
    %863 = vmatpush1.bf16.msra.mxu0 0
    %864 = vmatprep.mubr.bf16.mxu0 0
    %865 = vmatmul.mubr.bf16.gmra.mrb[0].mxu0 %v824
    %v866 = vpop.f32.mrb[0].mxu0
    %v867 = vadd.f32 0.0, %v866
    %v868 = vpop.f32.mrb[0].mxu0
    %v869 = vpop.f32.mrb[0].mxu0
    %v870 = vadd.f32 0.0, %v869
    %v871 = vpop.f32.mrb[0].mxu0
    %872 = vmatprep.mubr.bf16.mxu0 0
    %873 = vmatmul.mubr.bf16.gmra.mrb[0].mxu0 %v827
    %v874 = vpop.f32.mrb[0].mxu0
    %v875 = vadd.f32 0.0, %v874
    %v876 = vpop.f32.mrb[0].mxu0
    %v877 = vpop.f32.mrb[0].mxu0
    %v878 = vadd.f32 0.0, %v877
    %v879 = vpop.f32.mrb[0].mxu0
    %880 = vmatprep.mubr.bf16.mxu0 0
    %881 = vmatmul.mubr.bf16.gmra.mrb[0].mxu0 %v830
    %v882 = vpop.f32.mrb[0].mxu0
    %v883 = vadd.f32 0.0, %v882
    %v884 = vpop.f32.mrb[0].mxu0
    %v885 = vpop.f32.mrb[0].mxu0
    %v886 = vpop.f32.mrb[0].mxu0
    %887 = vdwg.mxu0
    %v896 = vunpack.c.l.b16 %v758
    %v897 = vunpack.c.l.b16 %v759
    %v898 = vunpack.c.l.b16 %v760
    %v899 = vunpack.c.l.b16 %v761
    %v900 = vunpack.c.l.b16 %v762
    %v901 = vunpack.c.l.b16 %v763
    %v902 = vunpack.c.l.b16 %v764
    %v903 = vunpack.c.l.b16 %v765
    %v904 = vpack.c.b16 %v897, %v896
    %v905 = vpack.c.b16 %v899, %v898
    %v906 = vpack.c.b16 %v901, %v900
    %v907 = vpack.c.b16 %v903, %v902
    %v912 = vsel %vm822, %v755, 0
    %v914 = vsel %vm822, %v756, 0
    %v916 = vsel %vm822, %v757, 0
    %918 = vmatprep.subr.bf16.mxu0 0
    %919 = vmatpush1.bf16.msra.mxu0 %v904
    %920 = vmatprep.subr.bf16.mxu0 0
    %921 = vmatpush1.bf16.msra.mxu0 %v905
    %922 = vmatprep.subr.bf16.mxu0 0
    %923 = vmatpush1.bf16.msra.mxu0 %v906
    %924 = vmatprep.subr.bf16.mxu0 0
    %925 = vmatpush1.bf16.msra.mxu0 %v907
    %926 = vmatprep.subr.bf16.mxu0 0
    %927 = vmatpush1.bf16.msra.mxu0 0
    %928 = vmatprep.subr.bf16.mxu0 0
    %929 = vmatpush1.bf16.msra.mxu0 0
    %930 = vmatprep.subr.bf16.mxu0 0
    %931 = vmatpush1.bf16.msra.mxu0 0
    %932 = vmatprep.subr.bf16.mxu0 0
    %933 = vmatpush1.bf16.msra.mxu0 0
    %934 = vmatprep.subr.bf16.mxu0 0
    %935 = vmatpush1.bf16.msra.mxu0 0
    %936 = vmatprep.subr.bf16.mxu0 0
    %937 = vmatpush1.bf16.msra.mxu0 0
    %938 = vmatprep.subr.bf16.mxu0 0
    %939 = vmatpush1.bf16.msra.mxu0 0
    %940 = vmatprep.subr.bf16.mxu0 0
    %941 = vmatpush1.bf16.msra.mxu0 0
    %942 = vmatprep.subr.bf16.mxu0 0
    %943 = vmatpush1.bf16.msra.mxu0 0
    %944 = vmatprep.subr.bf16.mxu0 0
    %945 = vmatpush1.bf16.msra.mxu0 0
    %946 = vmatprep.subr.bf16.mxu0 0
    %947 = vmatpush1.bf16.msra.mxu0 0
    %948 = vmatprep.subr.bf16.mxu0 0
    %949 = vmatpush1.bf16.msra.mxu0 0
    %950 = vmatprep.mubr.bf16.mxu0 0
    %951 = vmatmul.mubr.bf16.gmra.mrb[0].mxu0 %v912
    %v952 = vpop.f32.mrb[0].mxu0
    %v953 = vadd.f32 %v867, %v952
    %v954 = vpop.f32.mrb[0].mxu0
    %v955 = vpop.f32.mrb[0].mxu0
    %v956 = vadd.f32 %v870, %v955
    %v957 = vpop.f32.mrb[0].mxu0
    %958 = vmatprep.mubr.bf16.mxu0 0
    %959 = vmatmul.mubr.bf16.gmra.mrb[0].mxu0 %v914
    %v960 = vpop.f32.mrb[0].mxu0
    %v961 = vadd.f32 %v875, %v960
    %v962 = vpop.f32.mrb[0].mxu0
    %v963 = vpop.f32.mrb[0].mxu0
    %v964 = vadd.f32 %v878, %v963
    %v965 = vpop.f32.mrb[0].mxu0
    %966 = vmatprep.mubr.bf16.mxu0 0
    %967 = vmatmul.mubr.bf16.gmra.mrb[0].mxu0 %v916
    %v968 = vpop.f32.mrb[0].mxu0
    %v969 = vadd.f32 %v883, %v968
    %v970 = vpop.f32.mrb[0].mxu0
    %v971 = vpop.f32.mrb[0].mxu0
    %v972 = vpop.f32.mrb[0].mxu0
    %973 = vdwg.mxu0
    %s974 = scalar_lea.vmem [#allocation9], 64
    %v975 = vld [vmem:[%s974] sm:$0xf]
    %v976 = vld [vmem:[%s974 + $0x4] sm:$0xf]
    %v977 = vld [vmem:[%s974 + $0x8] sm:$0xf]
    %v978 = vld [vmem:[%s974 + $0xc] sm:$0xf]
    %v979 = vld [vmem:[%s974 + $0x10] sm:$0xf]
    %v980 = vld [vmem:[%s974 + $0x14] sm:$0xf]
    %v981 = vld [vmem:[%s974 + $0x18] sm:$0xf]
    %v982 = vld [vmem:[%s974 + $0x1c] sm:$0xf]
    %v986 = vrot.slane %v755, 1
    %v987 = vrot.slane %v756, 1
    %v988 = vsel %vm507, %v986, %v987
    %v989 = vrot.slane %v757, 1
    %v990 = vsel %vm507, %v987, %v989
    %v999 = vunpack.c.l.b16 %v975
    %v1000 = vunpack.c.l.b16 %v976
    %v1001 = vunpack.c.l.b16 %v977
    %v1002 = vunpack.c.l.b16 %v978
    %v1003 = vunpack.c.l.b16 %v979
    %v1004 = vunpack.c.l.b16 %v980
    %v1005 = vunpack.c.l.b16 %v981
    %v1006 = vunpack.c.l.b16 %v982
    %v1007 = vpack.c.b16 %v1000, %v999
    %v1008 = vpack.c.b16 %v1002, %v1001
    %v1009 = vpack.c.b16 %v1004, %v1003
    %v1010 = vpack.c.b16 %v1006, %v1005
    %v1016 = vsel %vm822, %v988, 0
    %v1019 = vsel %vm822, %v990, 0
    %v1022 = vsel %vm822, %v989, 0
    %1024 = vmatprep.subr.bf16.mxu0 0
    %1025 = vmatpush1.bf16.msra.mxu0 %v1007
    %1026 = vmatprep.subr.bf16.mxu0 0
    %1027 = vmatpush1.bf16.msra.mxu0 %v1008
    %1028 = vmatprep.subr.bf16.mxu0 0
    %1029 = vmatpush1.bf16.msra.mxu0 %v1009
    %1030 = vmatprep.subr.bf16.mxu0 0
    %1031 = vmatpush1.bf16.msra.mxu0 %v1010
    %1032 = vmatprep.subr.bf16.mxu0 0
    %1033 = vmatpush1.bf16.msra.mxu0 0
    %1034 = vmatprep.subr.bf16.mxu0 0
    %1035 = vmatpush1.bf16.msra.mxu0 0
    %1036 = vmatprep.subr.bf16.mxu0 0
    %1037 = vmatpush1.bf16.msra.mxu0 0
    %1038 = vmatprep.subr.bf16.mxu0 0
    %1039 = vmatpush1.bf16.msra.mxu0 0
    %1040 = vmatprep.subr.bf16.mxu0 0
    %1041 = vmatpush1.bf16.msra.mxu0 0
    %1042 = vmatprep.subr.bf16.mxu0 0
    %1043 = vmatpush1.bf16.msra.mxu0 0
    %1044 = vmatprep.subr.bf16.mxu0 0
    %1045 = vmatpush1.bf16.msra.mxu0 0
    %1046 = vmatprep.subr.bf16.mxu0 0
    %1047 = vmatpush1.bf16.msra.mxu0 0
    %1048 = vmatprep.subr.bf16.mxu0 0
    %1049 = vmatpush1.bf16.msra.mxu0 0
    %1050 = vmatprep.subr.bf16.mxu0 0
    %1051 = vmatpush1.bf16.msra.mxu0 0
    %1052 = vmatprep.subr.bf16.mxu0 0
    %1053 = vmatpush1.bf16.msra.mxu0 0
    %1054 = vmatprep.subr.bf16.mxu0 0
    %1055 = vmatpush1.bf16.msra.mxu0 0
    %1056 = vmatprep.mubr.bf16.mxu0 0
    %1057 = vmatmul.mubr.bf16.gmra.mrb[0].mxu0 %v1016
    %v1058 = vpop.f32.mrb[0].mxu0
    %v1059 = vadd.f32 0.0, %v1058
    %v1060 = vpop.f32.mrb[0].mxu0
    %v1061 = vpop.f32.mrb[0].mxu0
    %v1062 = vadd.f32 0.0, %v1061
    %v1063 = vpop.f32.mrb[0].mxu0
    %1064 = vmatprep.mubr.bf16.mxu0 0
    %1065 = vmatmul.mubr.bf16.gmra.mrb[0].mxu0 %v1019
    %v1066 = vpop.f32.mrb[0].mxu0
    %v1067 = vadd.f32 0.0, %v1066
    %v1068 = vpop.f32.mrb[0].mxu0
    %v1069 = vpop.f32.mrb[0].mxu0
    %v1070 = vadd.f32 0.0, %v1069
    %v1071 = vpop.f32.mrb[0].mxu0
    %1072 = vmatprep.mubr.bf16.mxu0 0
    %1073 = vmatmul.mubr.bf16.gmra.mrb[0].mxu0 %v1022
    %v1074 = vpop.f32.mrb[0].mxu0
    %v1075 = vadd.f32 0.0, %v1074
    %v1076 = vpop.f32.mrb[0].mxu0
    %v1077 = vpop.f32.mrb[0].mxu0
    %v1078 = vpop.f32.mrb[0].mxu0
    %1079 = vdwg.mxu0
    %v1080 = vadd.f32 %v953, %v1059
    %v1081 = vadd.f32 %v956, %v1062
    %v1082 = vadd.f32 %v961, %v1067
    %v1083 = vadd.f32 %v964, %v1070
    %v1084 = vadd.f32 %v969, %v1075
    %v1085 = vld [vmem:[%s8] sm:$0x1]
    %v1087 = vlaneseq
    %v1088 = vshrl.u32 %v1087, 7
    %v1089 = vsub.s32 0, %v1088
    %v1090 = vrot.slane %v1085, %v1089
    %v1092 = vadd.f32 %v1080, %v1090
    %v1093 = vadd.f32 %v1081, %v1090
    %v1094 = vadd.f32 %v1082, %v1090
    %v1095 = vadd.f32 %v1083, %v1090
    %v1096 = vadd.f32 %v1084, %v1090
    %v1097 = vmax.f32 %v1092, 0.0
    %v1098 = vmax.f32 %v1093, 0.0
    %v1099 = vmax.f32 %v1094, 0.0
    %v1100 = vmax.f32 %v1095, 0.0
    %v1101 = vmax.f32 %v1096, 0.0
    %v1102 = vpack.c.bf16 %v1098, %v1097
    %v1103 = vpack.c.bf16 %v1100, %v1099
    %v1104 = vpack.c.bf16 %v1101, %v1101
    %v1105 = vld [vmem:[#allocation10] sm:$0xf]
    %v1106 = vld [vmem:[#allocation10 + $0x4] sm:$0xf]
    %v1107 = vld [vmem:[#allocation10 + $0x8] sm:$0xf]
    %v1108 = vld [vmem:[#allocation10 + $0xc] sm:$0xf]
    %v1109 = vld [vmem:[#allocation10 + $0x10] sm:$0xf]
    %v1110 = vld [vmem:[#allocation10 + $0x14] sm:$0xf]
    %v1111 = vld [vmem:[#allocation10 + $0x18] sm:$0xf]
    %v1112 = vld [vmem:[#allocation10 + $0x1c] sm:$0xf]
    %v1121 = vunpack.c.l.b16 %v1105
    %v1122 = vunpack.c.l.b16 %v1106
    %v1123 = vunpack.c.l.b16 %v1107
    %v1124 = vunpack.c.l.b16 %v1108
    %v1125 = vunpack.c.l.b16 %v1109
    %v1126 = vunpack.c.l.b16 %v1110
    %v1127 = vunpack.c.l.b16 %v1111
    %v1128 = vunpack.c.l.b16 %v1112
    %v1129 = vpack.c.b16 %v1122, %v1121
    %v1130 = vpack.c.b16 %v1124, %v1123
    %v1131 = vpack.c.b16 %v1126, %v1125
    %v1132 = vpack.c.b16 %v1128, %v1127
    %v1138 = vsel %vm822, %v1102, 0
    %v1141 = vsel %vm822, %v1103, 0
    %v1144 = vsel %vm822, %v1104, 0
    %1146 = vmatprep.subr.bf16.mxu0 0
    %1147 = vmatpush1.bf16.msra.mxu0 %v1129
    %1148 = vmatprep.subr.bf16.mxu0 0
    %1149 = vmatpush1.bf16.msra.mxu0 %v1130
    %1150 = vmatprep.subr.bf16.mxu0 0
    %1151 = vmatpush1.bf16.msra.mxu0 %v1131
    %1152 = vmatprep.subr.bf16.mxu0 0
    %1153 = vmatpush1.bf16.msra.mxu0 %v1132
    %1154 = vmatprep.subr.bf16.mxu0 0
    %1155 = vmatpush1.bf16.msra.mxu0 0
    %1156 = vmatprep.subr.bf16.mxu0 0
    %1157 = vmatpush1.bf16.msra.mxu0 0
    %1158 = vmatprep.subr.bf16.mxu0 0
    %1159 = vmatpush1.bf16.msra.mxu0 0
    %1160 = vmatprep.subr.bf16.mxu0 0
    %1161 = vmatpush1.bf16.msra.mxu0 0
    %1162 = vmatprep.subr.bf16.mxu0 0
    %1163 = vmatpush1.bf16.msra.mxu0 0
    %1164 = vmatprep.subr.bf16.mxu0 0
    %1165 = vmatpush1.bf16.msra.mxu0 0
    %1166 = vmatprep.subr.bf16.mxu0 0
    %1167 = vmatpush1.bf16.msra.mxu0 0
    %1168 = vmatprep.subr.bf16.mxu0 0
    %1169 = vmatpush1.bf16.msra.mxu0 0
    %1170 = vmatprep.subr.bf16.mxu0 0
    %1171 = vmatpush1.bf16.msra.mxu0 0
    %1172 = vmatprep.subr.bf16.mxu0 0
    %1173 = vmatpush1.bf16.msra.mxu0 0
    %1174 = vmatprep.subr.bf16.mxu0 0
    %1175 = vmatpush1.bf16.msra.mxu0 0
    %1176 = vmatprep.subr.bf16.mxu0 0
    %1177 = vmatpush1.bf16.msra.mxu0 0
    %1178 = vmatprep.mubr.bf16.mxu0 0
    %1179 = vmatmul.mubr.bf16.gmra.mrb[0].mxu0 %v1138
    %v1180 = vpop.f32.mrb[0].mxu0
    %v1181 = vadd.f32 0.0, %v1180
    %v1182 = vpop.f32.mrb[0].mxu0
    %v1183 = vpop.f32.mrb[0].mxu0
    %v1184 = vadd.f32 0.0, %v1183
    %v1185 = vpop.f32.mrb[0].mxu0
    %1186 = vmatprep.mubr.bf16.mxu0 0
    %1187 = vmatmul.mubr.bf16.gmra.mrb[0].mxu0 %v1141
    %v1188 = vpop.f32.mrb[0].mxu0
    %v1189 = vadd.f32 0.0, %v1188
    %v1190 = vpop.f32.mrb[0].mxu0
    %v1191 = vpop.f32.mrb[0].mxu0
    %v1192 = vadd.f32 0.0, %v1191
    %v1193 = vpop.f32.mrb[0].mxu0
    %1194 = vmatprep.mubr.bf16.mxu0 0
    %1195 = vmatmul.mubr.bf16.gmra.mrb[0].mxu0 %v1144
    %v1196 = vpop.f32.mrb[0].mxu0
    %v1197 = vadd.f32 0.0, %v1196
    %v1198 = vpop.f32.mrb[0].mxu0
    %v1199 = vpop.f32.mrb[0].mxu0
    %v1200 = vpop.f32.mrb[0].mxu0
    %1201 = vdwg.mxu0
    %v1202 = vld [vmem:[#allocation12] sm:$0xf]
    %v1203 = vld [vmem:[#allocation12 + $0x4] sm:$0xf]
    %v1204 = vld [vmem:[#allocation12 + $0x8] sm:$0xf]
    %v1205 = vld [vmem:[#allocation12 + $0xc] sm:$0xf]
    %v1206 = vld [vmem:[#allocation12 + $0x10] sm:$0xf]
    %v1207 = vld [vmem:[#allocation12 + $0x14] sm:$0xf]
    %v1208 = vld [vmem:[#allocation12 + $0x18] sm:$0xf]
    %v1209 = vld [vmem:[#allocation12 + $0x1c] sm:$0xf]
    %v1210 = vld [vmem:[#allocation12 + $0x20] sm:$0x3]
    %v1211 = vpack.c.bf16 %v1184, %v1181
    %v1212 = vpack.c.bf16 %v1192, %v1189
    %v1213 = vpack.c.bf16 %v1197, %v1197
    %v1223 = vunpack.c.l.b16 %v1202
    %v1224 = vunpack.c.l.b16 %v1203
    %v1225 = vunpack.c.l.b16 %v1204
    %v1226 = vunpack.c.l.b16 %v1205
    %v1227 = vunpack.c.l.b16 %v1206
    %v1228 = vunpack.c.l.b16 %v1207
    %v1229 = vunpack.c.l.b16 %v1208
    %v1230 = vunpack.c.l.b16 %v1209
    %v1231 = vunpack.c.l.b16 %v1210
    %v1232 = vpack.c.b16 %v1224, %v1223
    %v1233 = vpack.c.b16 %v1226, %v1225
    %v1234 = vpack.c.b16 %v1228, %v1227
    %v1235 = vpack.c.b16 %v1230, %v1229
    %v1236 = vpack.c.b16 %v1231, %v1231
    %vm1237 = vcmask 277504
    %v1239 = vsel %vm1237, %v1232, 0
    %v1242 = vsel %vm1237, %v1233, 0
    %v1245 = vsel %vm1237, %v1234, 0
    %v1248 = vsel %vm1237, %v1235, 0
    %v1251 = vsel %vm1237, %v1236, 0
    %v1254 = vsel %vm695, %v1213, 0
    %1256 = vmatprep.subr.bf16.mxu0 0
    %1257 = vmatpush1.bf16.msra.mxu0 %v1211
    %1258 = vmatprep.subr.bf16.mxu0 0
    %1259 = vmatpush1.bf16.msra.mxu0 %v1212
    %1260 = vmatprep.subr.bf16.mxu0 0
    %1261 = vmatpush1.bf16.msra.mxu0 %v1254
    %1262 = vmatprep.subr.bf16.mxu0 0
    %1263 = vmatpush1.bf16.msra.mxu0 0
    %1264 = vmatprep.subr.bf16.mxu0 0
    %1265 = vmatpush1.bf16.msra.mxu0 0
    %1266 = vmatprep.subr.bf16.mxu0 0
    %1267 = vmatpush1.bf16.msra.mxu0 0
    %1268 = vmatprep.subr.bf16.mxu0 0
    %1269 = vmatpush1.bf16.msra.mxu0 0
    %1270 = vmatprep.subr.bf16.mxu0 0
    %1271 = vmatpush1.bf16.msra.mxu0 0
    %1272 = vmatprep.subr.bf16.mxu0 0
    %1273 = vmatpush1.bf16.msra.mxu0 0
    %1274 = vmatprep.subr.bf16.mxu0 0
    %1275 = vmatpush1.bf16.msra.mxu0 0
    %1276 = vmatprep.subr.bf16.mxu0 0
    %1277 = vmatpush1.bf16.msra.mxu0 0
    %1278 = vmatprep.subr.bf16.mxu0 0
    %1279 = vmatpush1.bf16.msra.mxu0 0
    %1280 = vmatprep.subr.bf16.mxu0 0
    %1281 = vmatpush1.bf16.msra.mxu0 0
    %1282 = vmatprep.subr.bf16.mxu0 0
    %1283 = vmatpush1.bf16.msra.mxu0 0
    %1284 = vmatprep.subr.bf16.mxu0 0
    %1285 = vmatpush1.bf16.msra.mxu0 0
    %1286 = vmatprep.subr.bf16.mxu0 0
    %1287 = vmatpush1.bf16.msra.mxu0 0
    %1288 = vmatprep.mubr.bf16.mxu0 0
    %1289 = vmatmul.mubr.bf16.gmra.mrb[0].mxu0 %v1239
    %v1290 = vpop.f32.mrb[0].mxu0
    %v1291 = vadd.f32 0.0, %v1290
    %v1292 = vpop.f32.mrb[0].mxu0
    %v1293 = vpop.f32.mrb[0].mxu0
    %v1294 = vadd.f32 0.0, %v1293
    %v1295 = vpop.f32.mrb[0].mxu0
    %1296 = vmatprep.mubr.bf16.mxu0 0
    %1297 = vmatmul.mubr.bf16.gmra.mrb[0].mxu0 %v1242
    %v1298 = vpop.f32.mrb[0].mxu0
    %v1299 = vadd.f32 0.0, %v1298
    %v1300 = vpop.f32.mrb[0].mxu0
    %v1301 = vpop.f32.mrb[0].mxu0
    %v1302 = vadd.f32 0.0, %v1301
    %v1303 = vpop.f32.mrb[0].mxu0
    %1304 = vmatprep.mubr.bf16.mxu0 0
    %1305 = vmatmul.mubr.bf16.gmra.mrb[0].mxu0 %v1245
    %v1306 = vpop.f32.mrb[0].mxu0
    %v1307 = vadd.f32 0.0, %v1306
    %v1308 = vpop.f32.mrb[0].mxu0
    %v1309 = vpop.f32.mrb[0].mxu0
    %v1310 = vadd.f32 0.0, %v1309
    %v1311 = vpop.f32.mrb[0].mxu0
    %1312 = vmatprep.mubr.bf16.mxu0 0
    %1313 = vmatmul.mubr.bf16.gmra.mrb[0].mxu0 %v1248
    %v1314 = vpop.f32.mrb[0].mxu0
    %v1315 = vadd.f32 0.0, %v1314
    %v1316 = vpop.f32.mrb[0].mxu0
    %v1317 = vpop.f32.mrb[0].mxu0
    %v1318 = vadd.f32 0.0, %v1317
    %v1319 = vpop.f32.mrb[0].mxu0
    %1320 = vmatprep.mubr.bf16.mxu0 0
    %1321 = vmatmul.mubr.bf16.gmra.mrb[0].mxu0 %v1251
    %v1322 = vpop.f32.mrb[0].mxu0
    %v1323 = vadd.f32 0.0, %v1322
    %v1324 = vpop.f32.mrb[0].mxu0
    %v1325 = vpop.f32.mrb[0].mxu0
    %v1326 = vpop.f32.mrb[0].mxu0
    %1327 = vdwg.mxu0
    %v1328 = vpack.c.bf16 %v1294, %v1291
    %v1329 = vpack.c.bf16 %v1302, %v1299
    %v1330 = vpack.c.bf16 %v1310, %v1307
    %v1331 = vpack.c.bf16 %v1318, %v1315
    %v1332 = vpack.c.bf16 %v1323, %v1323
    %v1333 = vld [vmem:[%s11] sm:$0xf]
    %v1334 = vld [vmem:[%s11 + $0x4] sm:$0xf]
    %v1335 = vld [vmem:[%s11 + $0x8] sm:$0xf]
    %v1336 = vld [vmem:[%s11 + $0xc] sm:$0xf]
    %v1337 = vld [vmem:[%s11 + $0x10] sm:$0xf]
    %v1338 = vld [vmem:[%s11 + $0x14] sm:$0xf]
    %v1339 = vld [vmem:[%s11 + $0x18] sm:$0xf]
    %v1340 = vld [vmem:[%s11 + $0x1c] sm:$0xf]
    %v1341 = vld [vmem:[%s11 + $0x20] sm:$0xf]
    %v1342 = vld [vmem:[%s11 + $0x24] sm:$0xf]
    %v1343 = vld [vmem:[%s11 + $0x28] sm:$0xf]
    %v1344 = vld [vmem:[%s11 + $0x2c] sm:$0xf]
    %v1345 = vld [vmem:[%s11 + $0x30] sm:$0xf]
    %v1346 = vld [vmem:[%s11 + $0x34] sm:$0xf]
    %v1347 = vld [vmem:[%s11 + $0x38] sm:$0xf]
    %v1348 = vld [vmem:[%s11 + $0x3c] sm:$0xf]
    %s1349 = scalar_lea.vmem %s11, 64
    %v1350 = vld [vmem:[%s1349] sm:$0xf]
    %v1351 = vld [vmem:[%s1349 + $0x4] sm:$0xf]
    %v1352 = vld [vmem:[%s1349 + $0x8] sm:$0xf]
    %v1353 = vld [vmem:[%s1349 + $0xc] sm:$0xf]
    %v1354 = vld [vmem:[%s1349 + $0x10] sm:$0xf]
    %v1355 = vld [vmem:[%s1349 + $0x14] sm:$0xf]
    %v1356 = vld [vmem:[%s1349 + $0x18] sm:$0xf]
    %v1357 = vld [vmem:[%s1349 + $0x1c] sm:$0xf]
    %v1358 = vld [vmem:[%s1349 + $0x20] sm:$0xf]
    %v1359 = vld [vmem:[%s1349 + $0x24] sm:$0xf]
    %v1360 = vld [vmem:[%s1349 + $0x28] sm:$0xf]
    %v1361 = vld [vmem:[%s1349 + $0x2c] sm:$0xf]
    %v1362 = vld [vmem:[%s1349 + $0x30] sm:$0xf]
    %v1363 = vld [vmem:[%s1349 + $0x34] sm:$0xf]
    %v1364 = vld [vmem:[%s1349 + $0x38] sm:$0xf]
    %v1365 = vld [vmem:[%s1349 + $0x3c] sm:$0xf]
    %v1367 = vshrl.u32 %v1328, 16
    %v1369 = vshll.u32 %v1328, 16
    %v1371 = vrot.slane %v1369, 1
    %v1372 = vor.u32 %v1367, %v1371
    %v1374 = vshll.u32 %v1329, 16
    %v1376 = vrot.slane %v1374, 1
    %v1377 = vsel %vm353, %v1372, %v1376
    %v1378 = vshrl.u32 %v1329, 16
    %v1380 = vor.u32 %v1378, %v1376
    %v1382 = vshll.u32 %v1330, 16
    %v1384 = vrot.slane %v1382, 1
    %v1385 = vsel %vm353, %v1380, %v1384
    %v1386 = vshrl.u32 %v1330, 16
    %v1388 = vor.u32 %v1386, %v1384
    %v1390 = vshll.u32 %v1331, 16
    %v1392 = vrot.slane %v1390, 1
    %v1393 = vsel %vm353, %v1388, %v1392
    %v1394 = vshrl.u32 %v1331, 16
    %v1396 = vor.u32 %v1394, %v1392
    %v1398 = vshll.u32 %v1332, 16
    %v1400 = vrot.slane %v1398, 1
    %v1401 = vsel %vm353, %v1396, %v1400
    %v1402 = vshrl.u32 %v1332, 16
    %v1404 = vor.u32 %v1402, %v1400
    %v1426 = vunpack.c.l.b16 %v1350
    %v1427 = vunpack.c.l.b16 %v1351
    %v1428 = vunpack.c.l.b16 %v1352
    %v1429 = vunpack.c.l.b16 %v1353
    %v1430 = vunpack.c.l.b16 %v1354
    %v1431 = vunpack.c.l.b16 %v1355
    %v1432 = vunpack.c.l.b16 %v1356
    %v1433 = vunpack.c.l.b16 %v1357
    %v1434 = vunpack.c.l.b16 %v1358
    %v1435 = vunpack.c.l.b16 %v1359
    %v1436 = vunpack.c.l.b16 %v1360
    %v1437 = vunpack.c.l.b16 %v1361
    %v1438 = vunpack.c.l.b16 %v1362
    %v1439 = vunpack.c.l.b16 %v1363
    %v1440 = vunpack.c.l.b16 %v1364
    %v1441 = vunpack.c.l.b16 %v1365
    %v1442 = vpack.c.b16 %v1427, %v1426
    %v1443 = vpack.c.b16 %v1429, %v1428
    %v1444 = vpack.c.b16 %v1431, %v1430
    %v1445 = vpack.c.b16 %v1433, %v1432
    %v1446 = vpack.c.b16 %v1435, %v1434
    %v1447 = vpack.c.b16 %v1437, %v1436
    %v1448 = vpack.c.b16 %v1439, %v1438
    %v1449 = vpack.c.b16 %v1441, %v1440
    %1458 = vmatprep.subr.bf16.mxu0 0
    %1459 = vmatpush1.bf16.msra.mxu0 %v1442
    %1460 = vmatprep.subr.bf16.mxu0 0
    %1461 = vmatpush1.bf16.msra.mxu0 %v1443
    %1462 = vmatprep.subr.bf16.mxu0 0
    %1463 = vmatpush1.bf16.msra.mxu0 %v1444
    %1464 = vmatprep.subr.bf16.mxu0 0
    %1465 = vmatpush1.bf16.msra.mxu0 %v1445
    %1466 = vmatprep.subr.bf16.mxu0 0
    %1467 = vmatpush1.bf16.msra.mxu0 %v1446
    %1468 = vmatprep.subr.bf16.mxu0 0
    %1469 = vmatpush1.bf16.msra.mxu0 %v1447
    %1470 = vmatprep.subr.bf16.mxu0 0
    %1471 = vmatpush1.bf16.msra.mxu0 %v1448
    %1472 = vmatprep.subr.bf16.mxu0 0
    %1473 = vmatpush1.bf16.msra.mxu0 %v1449
    %1474 = vmatprep.subr.bf16.mxu0 0
    %1475 = vmatpush1.bf16.msra.mxu0 0
    %1476 = vmatprep.subr.bf16.mxu0 0
    %1477 = vmatpush1.bf16.msra.mxu0 0
    %1478 = vmatprep.subr.bf16.mxu0 0
    %1479 = vmatpush1.bf16.msra.mxu0 0
    %1480 = vmatprep.subr.bf16.mxu0 0
    %1481 = vmatpush1.bf16.msra.mxu0 0
    %1482 = vmatprep.subr.bf16.mxu0 0
    %1483 = vmatpush1.bf16.msra.mxu0 0
    %1484 = vmatprep.subr.bf16.mxu0 0
    %1485 = vmatpush1.bf16.msra.mxu0 0
    %1486 = vmatprep.subr.bf16.mxu0 0
    %1487 = vmatpush1.bf16.msra.mxu0 0
    %1488 = vmatprep.subr.bf16.mxu0 0
    %1489 = vmatpush1.bf16.msra.mxu0 0
    %1490 = vmatprep.mubr.bf16.mxu0 0
    %1491 = vmatmul.mubr.bf16.gmra.mrb[0].mxu0 %v1377
    %v1492 = vpop.f32.mrb[0].mxu0
    %v1493 = vadd.f32 0.0, %v1492
    %v1494 = vpop.f32.mrb[0].mxu0
    %v1495 = vpop.f32.mrb[0].mxu0
    %v1496 = vadd.f32 0.0, %v1495
    %v1497 = vpop.f32.mrb[0].mxu0
    %1498 = vmatprep.mubr.bf16.mxu0 0
    %1499 = vmatmul.mubr.bf16.gmra.mrb[0].mxu0 %v1385
    %v1500 = vpop.f32.mrb[0].mxu0
    %v1501 = vadd.f32 0.0, %v1500
    %v1502 = vpop.f32.mrb[0].mxu0
    %v1503 = vpop.f32.mrb[0].mxu0
    %v1504 = vadd.f32 0.0, %v1503
    %v1505 = vpop.f32.mrb[0].mxu0
    %1506 = vmatprep.mubr.bf16.mxu0 0
    %1507 = vmatmul.mubr.bf16.gmra.mrb[0].mxu0 %v1393
    %v1508 = vpop.f32.mrb[0].mxu0
    %v1509 = vadd.f32 0.0, %v1508
    %v1510 = vpop.f32.mrb[0].mxu0
    %v1511 = vpop.f32.mrb[0].mxu0
    %v1512 = vadd.f32 0.0, %v1511
    %v1513 = vpop.f32.mrb[0].mxu0
    %1514 = vmatprep.mubr.bf16.mxu0 0
    %1515 = vmatmul.mubr.bf16.gmra.mrb[0].mxu0 %v1401
    %v1516 = vpop.f32.mrb[0].mxu0
    %v1517 = vadd.f32 0.0, %v1516
    %v1518 = vpop.f32.mrb[0].mxu0
    %v1519 = vpop.f32.mrb[0].mxu0
    %v1520 = vadd.f32 0.0, %v1519
    %v1521 = vpop.f32.mrb[0].mxu0
    %1522 = vmatprep.mubr.bf16.mxu0 0
    %1523 = vmatmul.mubr.bf16.gmra.mrb[0].mxu0 %v1404
    %v1524 = vpop.f32.mrb[0].mxu0
    %v1525 = vadd.f32 0.0, %v1524
    %v1526 = vpop.f32.mrb[0].mxu0
    %v1527 = vpop.f32.mrb[0].mxu0
    %v1528 = vpop.f32.mrb[0].mxu0
    %1529 = vdwg.mxu0
    %v1546 = vunpack.c.l.b16 %v1333
    %v1547 = vunpack.c.l.b16 %v1334
    %v1548 = vunpack.c.l.b16 %v1335
    %v1549 = vunpack.c.l.b16 %v1336
    %v1550 = vunpack.c.l.b16 %v1337
    %v1551 = vunpack.c.l.b16 %v1338
    %v1552 = vunpack.c.l.b16 %v1339
    %v1553 = vunpack.c.l.b16 %v1340
    %v1554 = vunpack.c.l.b16 %v1341
    %v1555 = vunpack.c.l.b16 %v1342
    %v1556 = vunpack.c.l.b16 %v1343
    %v1557 = vunpack.c.l.b16 %v1344
    %v1558 = vunpack.c.l.b16 %v1345
    %v1559 = vunpack.c.l.b16 %v1346
    %v1560 = vunpack.c.l.b16 %v1347
    %v1561 = vunpack.c.l.b16 %v1348
    %v1562 = vpack.c.b16 %v1547, %v1546
    %v1563 = vpack.c.b16 %v1549, %v1548
    %v1564 = vpack.c.b16 %v1551, %v1550
    %v1565 = vpack.c.b16 %v1553, %v1552
    %v1566 = vpack.c.b16 %v1555, %v1554
    %v1567 = vpack.c.b16 %v1557, %v1556
    %v1568 = vpack.c.b16 %v1559, %v1558
    %v1569 = vpack.c.b16 %v1561, %v1560
    %1578 = vmatprep.subr.bf16.mxu0 0
    %1579 = vmatpush1.bf16.msra.mxu0 %v1562
    %1580 = vmatprep.subr.bf16.mxu0 0
    %1581 = vmatpush1.bf16.msra.mxu0 %v1563
    %1582 = vmatprep.subr.bf16.mxu0 0
    %1583 = vmatpush1.bf16.msra.mxu0 %v1564
    %1584 = vmatprep.subr.bf16.mxu0 0
    %1585 = vmatpush1.bf16.msra.mxu0 %v1565
    %1586 = vmatprep.subr.bf16.mxu0 0
    %1587 = vmatpush1.bf16.msra.mxu0 %v1566
    %1588 = vmatprep.subr.bf16.mxu0 0
    %1589 = vmatpush1.bf16.msra.mxu0 %v1567
    %1590 = vmatprep.subr.bf16.mxu0 0
    %1591 = vmatpush1.bf16.msra.mxu0 %v1568
    %1592 = vmatprep.subr.bf16.mxu0 0
    %1593 = vmatpush1.bf16.msra.mxu0 %v1569
    %1594 = vmatprep.subr.bf16.mxu0 0
    %1595 = vmatpush1.bf16.msra.mxu0 0
    %1596 = vmatprep.subr.bf16.mxu0 0
    %1597 = vmatpush1.bf16.msra.mxu0 0
    %1598 = vmatprep.subr.bf16.mxu0 0
    %1599 = vmatpush1.bf16.msra.mxu0 0
    %1600 = vmatprep.subr.bf16.mxu0 0
    %1601 = vmatpush1.bf16.msra.mxu0 0
    %1602 = vmatprep.subr.bf16.mxu0 0
    %1603 = vmatpush1.bf16.msra.mxu0 0
    %1604 = vmatprep.subr.bf16.mxu0 0
    %1605 = vmatpush1.bf16.msra.mxu0 0
    %1606 = vmatprep.subr.bf16.mxu0 0
    %1607 = vmatpush1.bf16.msra.mxu0 0
    %1608 = vmatprep.subr.bf16.mxu0 0
    %1609 = vmatpush1.bf16.msra.mxu0 0
    %1610 = vmatprep.mubr.bf16.mxu0 0
    %1611 = vmatmul.mubr.bf16.gmra.mrb[0].mxu0 %v1328
    %v1612 = vpop.f32.mrb[0].mxu0
    %v1613 = vadd.f32 %v1493, %v1612
    %v1614 = vpop.f32.mrb[0].mxu0
    %v1615 = vpop.f32.mrb[0].mxu0
    %v1616 = vadd.f32 %v1496, %v1615
    %v1617 = vpop.f32.mrb[0].mxu0
    %1618 = vmatprep.mubr.bf16.mxu0 0
    %1619 = vmatmul.mubr.bf16.gmra.mrb[0].mxu0 %v1329
    %v1620 = vpop.f32.mrb[0].mxu0
    %v1621 = vadd.f32 %v1501, %v1620
    %v1622 = vpop.f32.mrb[0].mxu0
    %v1623 = vpop.f32.mrb[0].mxu0
    %v1624 = vadd.f32 %v1504, %v1623
    %v1625 = vpop.f32.mrb[0].mxu0
    %1626 = vmatprep.mubr.bf16.mxu0 0
    %1627 = vmatmul.mubr.bf16.gmra.mrb[0].mxu0 %v1330
    %v1628 = vpop.f32.mrb[0].mxu0
    %v1629 = vadd.f32 %v1509, %v1628
    %v1630 = vpop.f32.mrb[0].mxu0
    %v1631 = vpop.f32.mrb[0].mxu0
    %v1632 = vadd.f32 %v1512, %v1631
    %v1633 = vpop.f32.mrb[0].mxu0
    %1634 = vmatprep.mubr.bf16.mxu0 0
    %1635 = vmatmul.mubr.bf16.gmra.mrb[0].mxu0 %v1331
    %v1636 = vpop.f32.mrb[0].mxu0
    %v1637 = vadd.f32 %v1517, %v1636
    %v1638 = vpop.f32.mrb[0].mxu0
    %v1639 = vpop.f32.mrb[0].mxu0
    %v1640 = vadd.f32 %v1520, %v1639
    %v1641 = vpop.f32.mrb[0].mxu0
    %1642 = vmatprep.mubr.bf16.mxu0 0
    %1643 = vmatmul.mubr.bf16.gmra.mrb[0].mxu0 %v1332
    %v1644 = vpop.f32.mrb[0].mxu0
    %v1645 = vadd.f32 %v1525, %v1644
    %v1646 = vpop.f32.mrb[0].mxu0
    %v1647 = vpop.f32.mrb[0].mxu0
    %v1648 = vpop.f32.mrb[0].mxu0
    %1649 = vdwg.mxu0
    %s1650 = scalar_lea.vmem %s11, 128
    %v1651 = vld [vmem:[%s1650] sm:$0xf]
    %v1652 = vld [vmem:[%s1650 + $0x4] sm:$0xf]
    %v1653 = vld [vmem:[%s1650 + $0x8] sm:$0xf]
    %v1654 = vld [vmem:[%s1650 + $0xc] sm:$0xf]
    %v1655 = vld [vmem:[%s1650 + $0x10] sm:$0xf]
    %v1656 = vld [vmem:[%s1650 + $0x14] sm:$0xf]
    %v1657 = vld [vmem:[%s1650 + $0x18] sm:$0xf]
    %v1658 = vld [vmem:[%s1650 + $0x1c] sm:$0xf]
    %v1659 = vld [vmem:[%s1650 + $0x20] sm:$0xf]
    %v1660 = vld [vmem:[%s1650 + $0x24] sm:$0xf]
    %v1661 = vld [vmem:[%s1650 + $0x28] sm:$0xf]
    %v1662 = vld [vmem:[%s1650 + $0x2c] sm:$0xf]
    %v1663 = vld [vmem:[%s1650 + $0x30] sm:$0xf]
    %v1664 = vld [vmem:[%s1650 + $0x34] sm:$0xf]
    %v1665 = vld [vmem:[%s1650 + $0x38] sm:$0xf]
    %v1666 = vld [vmem:[%s1650 + $0x3c] sm:$0xf]
    %v1672 = vrot.slane %v1328, 1
    %v1673 = vrot.slane %v1329, 1
    %v1674 = vsel %vm507, %v1672, %v1673
    %v1675 = vrot.slane %v1330, 1
    %v1676 = vsel %vm507, %v1673, %v1675
    %v1677 = vrot.slane %v1331, 1
    %v1678 = vsel %vm507, %v1675, %v1677
    %v1679 = vrot.slane %v1332, 1
    %v1680 = vsel %vm507, %v1677, %v1679
    %v1702 = vunpack.c.l.b16 %v1651
    %v1703 = vunpack.c.l.b16 %v1652
    %v1704 = vunpack.c.l.b16 %v1653
    %v1705 = vunpack.c.l.b16 %v1654
    %v1706 = vunpack.c.l.b16 %v1655
    %v1707 = vunpack.c.l.b16 %v1656
    %v1708 = vunpack.c.l.b16 %v1657
    %v1709 = vunpack.c.l.b16 %v1658
    %v1710 = vunpack.c.l.b16 %v1659
    %v1711 = vunpack.c.l.b16 %v1660
    %v1712 = vunpack.c.l.b16 %v1661
    %v1713 = vunpack.c.l.b16 %v1662
    %v1714 = vunpack.c.l.b16 %v1663
    %v1715 = vunpack.c.l.b16 %v1664
    %v1716 = vunpack.c.l.b16 %v1665
    %v1717 = vunpack.c.l.b16 %v1666
    %v1718 = vpack.c.b16 %v1703, %v1702
    %v1719 = vpack.c.b16 %v1705, %v1704
    %v1720 = vpack.c.b16 %v1707, %v1706
    %v1721 = vpack.c.b16 %v1709, %v1708
    %v1722 = vpack.c.b16 %v1711, %v1710
    %v1723 = vpack.c.b16 %v1713, %v1712
    %v1724 = vpack.c.b16 %v1715, %v1714
    %v1725 = vpack.c.b16 %v1717, %v1716
    %1734 = vmatprep.subr.bf16.mxu0 0
    %1735 = vmatpush1.bf16.msra.mxu0 %v1718
    %1736 = vmatprep.subr.bf16.mxu0 0
    %1737 = vmatpush1.bf16.msra.mxu0 %v1719
    %1738 = vmatprep.subr.bf16.mxu0 0
    %1739 = vmatpush1.bf16.msra.mxu0 %v1720
    %1740 = vmatprep.subr.bf16.mxu0 0
    %1741 = vmatpush1.bf16.msra.mxu0 %v1721
    %1742 = vmatprep.subr.bf16.mxu0 0
    %1743 = vmatpush1.bf16.msra.mxu0 %v1722
    %1744 = vmatprep.subr.bf16.mxu0 0
    %1745 = vmatpush1.bf16.msra.mxu0 %v1723
    %1746 = vmatprep.subr.bf16.mxu0 0
    %1747 = vmatpush1.bf16.msra.mxu0 %v1724
    %1748 = vmatprep.subr.bf16.mxu0 0
    %1749 = vmatpush1.bf16.msra.mxu0 %v1725
    %1750 = vmatprep.subr.bf16.mxu0 0
    %1751 = vmatpush1.bf16.msra.mxu0 0
    %1752 = vmatprep.subr.bf16.mxu0 0
    %1753 = vmatpush1.bf16.msra.mxu0 0
    %1754 = vmatprep.subr.bf16.mxu0 0
    %1755 = vmatpush1.bf16.msra.mxu0 0
    %1756 = vmatprep.subr.bf16.mxu0 0
    %1757 = vmatpush1.bf16.msra.mxu0 0
    %1758 = vmatprep.subr.bf16.mxu0 0
    %1759 = vmatpush1.bf16.msra.mxu0 0
    %1760 = vmatprep.subr.bf16.mxu0 0
    %1761 = vmatpush1.bf16.msra.mxu0 0
    %1762 = vmatprep.subr.bf16.mxu0 0
    %1763 = vmatpush1.bf16.msra.mxu0 0
    %1764 = vmatprep.subr.bf16.mxu0 0
    %1765 = vmatpush1.bf16.msra.mxu0 0
    %1766 = vmatprep.mubr.bf16.mxu0 0
    %1767 = vmatmul.mubr.bf16.gmra.mrb[0].mxu0 %v1674
    %v1768 = vpop.f32.mrb[0].mxu0
    %v1769 = vadd.f32 0.0, %v1768
    %v1770 = vpop.f32.mrb[0].mxu0
    %v1771 = vpop.f32.mrb[0].mxu0
    %v1772 = vadd.f32 0.0, %v1771
    %v1773 = vpop.f32.mrb[0].mxu0
    %1774 = vmatprep.mubr.bf16.mxu0 0
    %1775 = vmatmul.mubr.bf16.gmra.mrb[0].mxu0 %v1676
    %v1776 = vpop.f32.mrb[0].mxu0
    %v1777 = vadd.f32 0.0, %v1776
    %v1778 = vpop.f32.mrb[0].mxu0
    %v1779 = vpop.f32.mrb[0].mxu0
    %v1780 = vadd.f32 0.0, %v1779
    %v1781 = vpop.f32.mrb[0].mxu0
    %1782 = vmatprep.mubr.bf16.mxu0 0
    %1783 = vmatmul.mubr.bf16.gmra.mrb[0].mxu0 %v1678
    %v1784 = vpop.f32.mrb[0].mxu0
    %v1785 = vadd.f32 0.0, %v1784
    %v1786 = vpop.f32.mrb[0].mxu0
    %v1787 = vpop.f32.mrb[0].mxu0
    %v1788 = vadd.f32 0.0, %v1787
    %v1789 = vpop.f32.mrb[0].mxu0
    %1790 = vmatprep.mubr.bf16.mxu0 0
    %1791 = vmatmul.mubr.bf16.gmra.mrb[0].mxu0 %v1680
    %v1792 = vpop.f32.mrb[0].mxu0
    %v1793 = vadd.f32 0.0, %v1792
    %v1794 = vpop.f32.mrb[0].mxu0
    %v1795 = vpop.f32.mrb[0].mxu0
    %v1796 = vadd.f32 0.0, %v1795
    %v1797 = vpop.f32.mrb[0].mxu0
    %1798 = vmatprep.mubr.bf16.mxu0 0
    %1799 = vmatmul.mubr.bf16.gmra.mrb[0].mxu0 %v1679
    %v1800 = vpop.f32.mrb[0].mxu0
    %v1801 = vadd.f32 0.0, %v1800
    %v1802 = vpop.f32.mrb[0].mxu0
    %v1803 = vpop.f32.mrb[0].mxu0
    %v1804 = vpop.f32.mrb[0].mxu0
    %1805 = vdwg.mxu0
    %v1806 = vadd.f32 %v1613, %v1769
    %v1807 = vadd.f32 %v1616, %v1772
    %v1808 = vadd.f32 %v1621, %v1777
    %v1809 = vadd.f32 %v1624, %v1780
    %v1810 = vadd.f32 %v1629, %v1785
    %v1811 = vadd.f32 %v1632, %v1788
    %v1812 = vadd.f32 %v1637, %v1793
    %v1813 = vadd.f32 %v1640, %v1796
    %v1814 = vadd.f32 %v1645, %v1801
    %v1815 = vld [vmem:[%s12] sm:$0x1]
    %v1817 = vlaneseq
    %v1818 = vshrl.u32 %v1817, 7
    %v1819 = vsub.s32 0, %v1818
    %v1820 = vrot.slane %v1815, %v1819
    %v1822 = vadd.f32 %v1806, %v1820
    %v1823 = vadd.f32 %v1807, %v1820
    %v1824 = vadd.f32 %v1808, %v1820
    %v1825 = vadd.f32 %v1809, %v1820
    %v1826 = vadd.f32 %v1810, %v1820
    %v1827 = vadd.f32 %v1811, %v1820
    %v1828 = vadd.f32 %v1812, %v1820
    %v1829 = vadd.f32 %v1813, %v1820
    %v1830 = vadd.f32 %v1814, %v1820
    %v1831 = vsub.f32 0.0, %v1822
    %v1832 = vsub.f32 0.0, %v1823
    %v1833 = vsub.f32 0.0, %v1824
    %v1834 = vsub.f32 0.0, %v1825
    %v1835 = vsub.f32 0.0, %v1826
    %v1836 = vsub.f32 0.0, %v1827
    %v1837 = vsub.f32 0.0, %v1828
    %v1838 = vsub.f32 0.0, %v1829
    %v1839 = vsub.f32 0.0, %v1830
    %v1840 = vmul.f32 %v1831, 1.442695
    %v1841 = vpow.pop %v1840
    %v1842 = vmul.f32 %v1832, 1.442695
    %v1843 = vpow.pop %v1842
    %v1844 = vmul.f32 %v1833, 1.442695
    %v1845 = vpow.pop %v1844
    %v1846 = vmul.f32 %v1834, 1.442695
    %v1847 = vpow.pop %v1846
    %v1848 = vmul.f32 %v1835, 1.442695
    %v1849 = vpow.pop %v1848
    %v1850 = vmul.f32 %v1836, 1.442695
    %v1851 = vpow.pop %v1850
    %v1852 = vmul.f32 %v1837, 1.442695
    %v1853 = vpow.pop %v1852
    %v1854 = vmul.f32 %v1838, 1.442695
    %v1855 = vpow.pop %v1854
    %v1856 = vmul.f32 %v1839, 1.442695
    %v1857 = vpow.pop %v1856
    %v1858 = vadd.f32 %v1841, 1.0
    %v1859 = vadd.f32 %v1843, 1.0
    %v1860 = vadd.f32 %v1845, 1.0
    %v1861 = vadd.f32 %v1847, 1.0
    %v1862 = vadd.f32 %v1849, 1.0
    %v1863 = vadd.f32 %v1851, 1.0
    %v1864 = vadd.f32 %v1853, 1.0
    %v1865 = vadd.f32 %v1855, 1.0
    %v1866 = vadd.f32 %v1857, 1.0
    %v1867 = vrcp.pop %v1858
    %v1868 = vrcp.pop %v1859
    %v1869 = vrcp.pop %v1860
    %v1870 = vrcp.pop %v1861
    %v1871 = vrcp.pop %v1862
    %v1872 = vrcp.pop %v1863
    %v1873 = vrcp.pop %v1864
    %v1874 = vrcp.pop %v1865
    %v1875 = vrcp.pop %v1866
    %1876 = vst [vmem:[%s13] sm:$0xff] %v1867
    %1877 = vst [vmem:[%s13 + $0x8] sm:$0xff] %v1868
    %1878 = vst [vmem:[%s13 + $0x10] sm:$0xff] %v1869
    %1879 = vst [vmem:[%s13 + $0x18] sm:$0xff] %v1870
    %s1880 = scalar_lea.vmem %s13, 32
    %1881 = vst [vmem:[%s1880 - $0x2] sm:$0xfc] %v1871
    %1882 = vst [vmem:[%s1880 + $0x6] sm:$0xff] %v1872
    %1883 = vst [vmem:[%s1880 + $0xe] sm:$0xff] %v1873
    %1884 = vst [vmem:[%s1880 + $0x16] sm:$0xff] %v1874
    %1885 = vst [vmem:[%s1880 + $0x1e] sm:$0x3] %v1875
    // Predicated region
    $region82: #{forward.1} parent=1 // pred_check
      _
    $region83: #{forward.1} parent=1 // pred_check_branch
      %1887 = sbr.rel (0) target = $region85
    $region84: #{forward.1} parent=1 // pred_region
      _
    $region85: #{forward.1} parent=1 // pred_fallthru
      _
    // Predicated region
    $region86: #{forward.1} parent=1 // pred_check
      _
    $region87: #{forward.1} parent=1 // pred_check_branch
      %1889 = sbr.rel (0) target = $region89
    $region88: #{forward.1} parent=1 // pred_region
      _
    $region89: #{forward.1} parent=1 // pred_fallthru
      _
    %1890 = vsyncpa [#allocation3], 1
    %1891 = vsyncpa [#allocation5], 1
    %1892 = vsyncpa [#allocation8], 1
    %1893 = vsyncpa [#allocation11], 1

</llo_original>
